<compile_context>
chip_gen: v7x
topology: tpu7x:2x2x1
jax: 0.10.0
libtpu: 0.0.40
codegen_flags: <defaults>
</compile_context>

<pallas_src>
import math
from functools import partial

import jax
import jax.numpy as jnp
from jax import lax
from jax.experimental import pallas as pl
from jax.experimental.pallas import tpu as pltpu


# ----------------------------- Pallas kernel body ---------------------------
def _tl_body(q_ref, k_ref, v_ref, wqkv_ref, wo_ref, w1_ref, w2_ref, vp_ref,
             out_ref, attn_scr, *, n_heads, d_k, seq_len, mask, apply_pos,
             same_qkv, compute_dtype, eps):
    N, D = q_ref.shape            # N = Bt * S (flattened batch*seq), D = d_model
    S = seq_len
    Bt = N // S
    d_ff = w1_ref.shape[1]
    cd = compute_dtype

    # ---- packed bias / LayerNorm vectors (one small DMA, sliced row-wise) ----
    bq = vp_ref[0:1, :D]
    bk = vp_ref[1:2, :D]
    bv = vp_ref[2:3, :D]
    bo = vp_ref[3:4, :D]
    b1 = vp_ref[4:5, :d_ff]
    b2 = vp_ref[5:6, :D]
    g1 = vp_ref[6:7, :D]
    be1 = vp_ref[7:8, :D]
    g2 = vp_ref[8:9, :D]
    be2 = vp_ref[9:10, :D]

    # Activations arrive already in compute dtype; residual stream stays f32.
    q_act = q_ref[...]
    q_res = q_act.astype(jnp.float32)                          # (N, D)

    # ---- q/k/v projections (fused single MXU call when q is k is v) ----
    if same_qkv:
        qkv = jnp.dot(q_act, wqkv_ref[...],
                      preferred_element_type=jnp.float32)      # (N, 3D)
        qp = qkv[:, :D] + bq
        kp = qkv[:, D:2 * D] + bk
        vp = qkv[:, 2 * D:] + bv
    else:
        qp = jnp.dot(q_act, wqkv_ref[:, :D],
                     preferred_element_type=jnp.float32) + bq
        kp = jnp.dot(k_ref[...], wqkv_ref[:, D:2 * D],
                     preferred_element_type=jnp.float32) + bk
        vp = jnp.dot(v_ref[...], wqkv_ref[:, 2 * D:],
                     preferred_element_type=jnp.float32) + bv

    # Fold 1/sqrt(d_k) into q once for all heads.
    qp = qp * jnp.float32(1.0 / math.sqrt(d_k))

    # Batched-over-batch views (leading-dim reshape only; last dim unchanged).
    qp3 = qp.reshape(Bt, S, D)
    kp3 = kp.reshape(Bt, S, D)
    vp3 = vp.reshape(Bt, S, D)

    # Causal mask (hoisted once, shared by all heads).
    #   mask == 0 -> attend strictly to the past (j < i), row 0 zero-padded later
    #   mask == 1 -> attend to past and current (j <= i)
    row = lax.broadcasted_iota(jnp.int32, (S, S), 0)
    col = lax.broadcasted_iota(jnp.int32, (S, S), 1)
    valid = (col < row) if mask == 0 else (col <= row)

    # ---- attention heads: write each head's context into the f32 VMEM scratch
    #      at lane offset h*d_k, then do ONE output-projection matmul.        ----
    # TODO(synk): for large n_heads make heads a grid axis (VMEM accumulator +
    # pl.when init/finalize) so per-head temporaries never co-live in vregs.
    for h in range(n_heads):                                   # small static loop
        lo = h * d_k
        qh = qp3[:, :, lo:lo + d_k].astype(cd)                 # (Bt, S, d_k)
        kh = kp3[:, :, lo:lo + d_k].astype(cd)
        vh = vp3[:, :, lo:lo + d_k].astype(cd)
        # scores[b, i, j] = qh[b, i] . kh[b, j]   (no materialized transpose)
        scores = jnp.einsum('bsd,btd->bst', qh, kh,
                            preferred_element_type=jnp.float32)
        scores = jnp.where(valid, scores, jnp.float32(-1e32))  # finite sentinel
        m = jnp.max(scores, axis=-1, keepdims=True)
        e = jnp.exp(scores - m)
        p = e * pl.reciprocal(jnp.sum(e, axis=-1, keepdims=True), approx=True)
        o_h = jnp.einsum('bst,btd->bsd', p.astype(cd), vh,
                         preferred_element_type=jnp.float32)    # (Bt, S, d_k)
        attn_scr[:, lo:lo + d_k] = o_h.reshape(N, d_k)          # ends o_h's live range

    # Single K=D output projection: concat(heads) @ Wo.
    attn_proj = jnp.dot(attn_scr[...].astype(cd), wo_ref[...],
                        preferred_element_type=jnp.float32)

    if mask == 0:
        # zero_pad: attention output at query position 0 is zero for every head;
        # applying it once on the (linear) pre-bias projection is identical.
        spos = lax.broadcasted_iota(jnp.int32, (Bt, S, 1), 1).reshape(N, 1)
        attn_proj = jnp.where(spos == 0, jnp.float32(0.0), attn_proj)

    # ---- output projection bias + residual + LayerNorm1 (float32) ----
    query2 = attn_proj + bo
    x = q_res + query2                                         # dropout1 = identity (eval)
    mu = jnp.mean(x, axis=-1, keepdims=True)
    var = jnp.mean((x - mu) ** 2, axis=-1, keepdims=True)
    x = (x - mu) * lax.rsqrt(var + eps) * g1 + be1

    # ---- position-wise FFN + residual + LayerNorm2 ----
    if apply_pos:
        h1 = jnp.dot(x.astype(cd), w1_ref[...],
                     preferred_element_type=jnp.float32) + b1
        h1 = jnp.maximum(h1, 0.0)                              # dropout = identity (eval)
        q2 = jnp.dot(h1.astype(cd), w2_ref[...],
                     preferred_element_type=jnp.float32) + b2
        x = x + q2                                             # dropout2 = identity (eval)
        mu = jnp.mean(x, axis=-1, keepdims=True)
        var = jnp.mean((x - mu) ** 2, axis=-1, keepdims=True)
        x = (x - mu) * lax.rsqrt(var + eps) * g2 + be2

    out_ref[...] = x.astype(out_ref.dtype)


def _tl_kernel_fused(q_ref, wqkv_ref, wo_ref, w1_ref, w2_ref, vp_ref,
                     out_ref, attn_scr, **kw):
    _tl_body(q_ref, q_ref, q_ref, wqkv_ref, wo_ref, w1_ref, w2_ref, vp_ref,
             out_ref, attn_scr, same_qkv=True, **kw)


def _tl_kernel(q_ref, k_ref, v_ref, wqkv_ref, wo_ref, w1_ref, w2_ref, vp_ref,
               out_ref, attn_scr, **kw):
    _tl_body(q_ref, k_ref, v_ref, wqkv_ref, wo_ref, w1_ref, w2_ref, vp_ref,
             out_ref, attn_scr, same_qkv=False, **kw)


# ------------------------------- wrapper ------------------------------------
def transformer_layer(mask, query, key, values, params, *, n_heads,
                      apply_pos=True, compute_dtype=jnp.float32,
                      batch_block=None, same_qkv=None, act_buffers=None,
                      vmem_limit_bytes=None):
    """SAKT TransformerLayer forward (eval mode).

    batch_block : batches per grid step.  None -> whole batch in one step
        (recommended on single-TC v5e/v6e); B//2 on v7x so the "parallel"
        grid axis shards across its 2 TensorCores.
    compute_dtype : MXU input dtype.  bf16 on v6e/v7x halves activation HBM
        traffic (activations are stored at this dtype); keep f32 on v5e.
    same_qkv : force the fused single-input QKV path (None -> `is` check).
    act_buffers : activation pipeline depth when the grid has >1 step
        (pl.Buffered(n)); weights keep the default depth.
    vmem_limit_bytes : explicit scoped-VMEM budget (None -> auto estimate;
        re-derive batch_block for v7x's 64 MiB VMEM).
    """
    B, S, D = query.shape
    d_k = D // n_heads
    d_ff = params["w1"].shape[1]
    Bt = B if batch_block is None else batch_block
    assert B % Bt == 0, "batch_block must divide batch"
    cd = jnp.dtype(compute_dtype)
    out_dtype = query.dtype

    if same_qkv is None:
        same_qkv = (query is key) and (key is values)

    # ---- weights (q|k|v packed for the fused MXU call) ----
    wqkv = jnp.concatenate([params["wq"], params["wk"], params["wv"]],
                           axis=1).astype(cd)                  # (D, 3D)
    wo = params["wo"].astype(cd)                               # (D, D)
    w1 = params["w1"].astype(cd)                               # (D, d_ff)
    w2 = params["w2"].astype(cd)                               # (d_ff, D)

    # ---- all (1, *) bias / LayerNorm vectors packed into ONE (10, W) input ----
    W = max(D, d_ff)

    def _row(v):
        return jnp.pad(v.astype(jnp.float32), ((0, 0), (0, W - v.shape[1])))

    vp_packed = jnp.concatenate([
        _row(params["bq"]), _row(params["bk"]), _row(params["bv"]),
        _row(params["bo"]), _row(params["b1"]), _row(params["b2"]),
        _row(params["g1"]), _row(params["beta1"]),
        _row(params["g2"]), _row(params["beta2"]),
    ], axis=0)                                                 # (10, W) f32

    # ---- activations: flattened to (B*S, D), stored at compute dtype in HBM ----
    q2d = query.reshape(B * S, D).astype(cd)
    if same_qkv:
        acts = (q2d,)                                          # 1/3 the activation DMA
    else:
        acts = (q2d,
                key.reshape(B * S, D).astype(cd),
                values.reshape(B * S, D).astype(cd))

    n_rows = Bt * S
    grid = (B // Bt,)

    act_kwargs = {}
    if act_buffers is not None and grid[0] > 1:
        act_kwargs["pipeline_mode"] = pl.Buffered(act_buffers)

    def act_spec():
        return pl.BlockSpec((n_rows, D), lambda b: (b, 0), **act_kwargs)

    def w_spec(shape):
        return pl.BlockSpec(shape, lambda b: (0,) * len(shape))

    in_specs = [act_spec() for _ in acts] + [
        w_spec((D, 3 * D)),        # wqkv
        w_spec((D, D)),            # wo
        w_spec((D, d_ff)),         # w1
        w_spec((d_ff, D)),         # w2
        w_spec((10, W)),           # packed bias/LN vectors
    ]

    # Explicit VMEM budget (double-buffered activations + output, weights, scratch).
    if vmem_limit_bytes is None:
        slab_in = n_rows * D * cd.itemsize
        slab_out = n_rows * D * jnp.dtype(out_dtype).itemsize
        w_bytes = wqkv.nbytes + wo.nbytes + w1.nbytes + w2.nbytes + vp_packed.nbytes
        est = 2 * (len(acts) * slab_in + slab_out) + 2 * w_bytes + n_rows * D * 4
        est += 8 << 20             # headroom for in-kernel temporaries (scores, FFN)
        vmem_limit_bytes = int(min(max(est, 16 << 20), 64 << 20))

    kernel_fn = _tl_kernel_fused if same_qkv else _tl_kernel
    kernel = partial(kernel_fn, n_heads=n_heads, d_k=d_k, seq_len=S,
                     mask=int(mask), apply_pos=apply_pos,
                     compute_dtype=cd, eps=1e-5)

    out2d = pl.pallas_call(
        kernel,
        out_shape=jax.ShapeDtypeStruct((B * S, D), out_dtype),
        grid=grid,
        in_specs=in_specs,
        out_specs=pl.BlockSpec((n_rows, D), lambda b: (b, 0)),
        scratch_shapes=[pltpu.VMEM((n_rows, D), jnp.float32)],   # concat(heads) scratch
        compiler_params=pltpu.CompilerParams(
            dimension_semantics=("parallel",),
            vmem_limit_bytes=vmem_limit_bytes),
    )(*acts, wqkv, wo, w1, w2, vp_packed)
    return out2d.reshape(B, S, D)


# -------------------------- pure-JAX reference -------------------------------
def reference(mask, query, key, values, p, *, n_heads, apply_pos=True, eps=1e-5):
    B, S, D = query.shape
    d_k = D // n_heads

    def lin(x, w, b):
        return x @ w + b[0]

    def split(x):
        return x.reshape(B, S, n_heads, d_k).transpose(0, 2, 1, 3)

    qp = split(lin(query, p["wq"], p["bq"]))
    kp = split(lin(key, p["wk"], p["bk"]))
    vp = split(lin(values, p["wv"], p["bv"]))
    scores = (qp @ kp.transpose(0, 1, 3, 2)) / math.sqrt(d_k)
    row = jnp.arange(S)[:, None]
    col = jnp.arange(S)[None, :]
    valid = (col < row) if mask == 0 else (col <= row)
    scores = jnp.where(valid, scores, -1e32)
    scores = jax.nn.softmax(scores, axis=-1)
    if mask == 0:
        scores = jnp.where((row == 0)[None, None], 0.0, scores)
    attn = (scores @ vp).transpose(0, 2, 1, 3).reshape(B, S, D)
    query2 = lin(attn, p["wo"], p["bo"])
    x = query + query2
    mu = x.mean(-1, keepdims=True)
    var = ((x - mu) ** 2).mean(-1, keepdims=True)
    x = (x - mu) / jnp.sqrt(var + eps) * p["g1"][0] + p["beta1"][0]
    if apply_pos:
        h1 = jnp.maximum(lin(x, p["w1"], p["b1"]), 0.0)
        q2 = lin(h1, p["w2"], p["b2"])
        x = x + q2
        mu = x.mean(-1, keepdims=True)
        var = ((x - mu) ** 2).mean(-1, keepdims=True)
        x = (x - mu) / jnp.sqrt(var + eps) * p["g2"][0] + p["beta2"][0]
    return x


# --------------------------------- main --------------------------------------
if __name__ == "__main__":
    B, S, D, H, D_FF = 2, 8, 32, 2, 64   # d_model=32, d_feature=d_k=16, n_heads=2, d_ff=64
    key0 = jax.random.PRNGKey(0)
    ks = jax.random.split(key0, 12)

    def xavier(k, shape):
        bound = math.sqrt(6.0 / (shape[0] + shape[1]))
        return jax.random.uniform(k, shape, jnp.float32, -bound, bound)

    params = {
        "wq": xavier(ks[0], (D, D)),   "bq": jnp.zeros((1, D), jnp.float32),
        "wk": xavier(ks[1], (D, D)),   "bk": jnp.zeros((1, D), jnp.float32),
        "wv": xavier(ks[2], (D, D)),   "bv": jnp.zeros((1, D), jnp.float32),
        "wo": xavier(ks[3], (D, D)),   "bo": jnp.zeros((1, D), jnp.float32),
        "w1": xavier(ks[4], (D, D_FF)),
        "b1": 0.01 * jax.random.normal(ks[5], (1, D_FF), jnp.float32),
        "w2": xavier(ks[6], (D_FF, D)),
        "b2": 0.01 * jax.random.normal(ks[7], (1, D), jnp.float32),
        "g1": jnp.ones((1, D), jnp.float32),  "beta1": jnp.zeros((1, D), jnp.float32),
        "g2": jnp.ones((1, D), jnp.float32),  "beta2": jnp.zeros((1, D), jnp.float32),
    }

    query = jax.random.normal(ks[8], (B, S, D), jnp.float32)
    keyx = jax.random.normal(ks[9], (B, S, D), jnp.float32)
    values = jax.random.normal(ks[10], (B, S, D), jnp.float32)

    # The only intended numeric deviations from the f32 reference are the EUP
    # approximate reciprocal / rsqrt (plus reduction order, and bf16 quantization
    # in the bf16 path); structural bugs would show O(1) errors.
    TOL_F32 = 2e-2
    TOL_BF16 = 1e-1

    # (1) distinct q/k/v (cross-attention style projections), both masks, f32.
    for mask in (0, 1):
        out = jax.block_until_ready(
            transformer_layer(mask, query, keyx, values, params, n_heads=H))
        ref = reference(mask, query, keyx, values, params, n_heads=H)
        assert out.shape == (B, S, D)
        assert jnp.allclose(out, ref, atol=TOL_F32, rtol=TOL_F32), \
            f"mismatch (mask={mask}): {jnp.max(jnp.abs(out - ref))}"

    # (2) self-attention: fused single-activation-input QKV path (1/3 the DMA).
    out = jax.block_until_ready(
        transformer_layer(0, query, query, query, params, n_heads=H))
    ref = reference(0, query, query, query, params, n_heads=H)
    assert jnp.allclose(out, ref, atol=TOL_F32, rtol=TOL_F32), \
        f"fused-QKV mismatch: {jnp.max(jnp.abs(out - ref))}"

    # (3) multi-step batch grid (e.g. batch_block=B//2 on v7x: one slab per
    #     TensorCore) with deeper activation buffering.
    out = jax.block_until_ready(
        transformer_layer(1, query, keyx, values, params, n_heads=H,
                          batch_block=1, act_buffers=3))
    ref = reference(1, query, keyx, values, params, n_heads=H)
    assert jnp.allclose(out, ref, atol=TOL_F32, rtol=TOL_F32), \
        f"batch-grid mismatch: {jnp.max(jnp.abs(out - ref))}"

    # (4) bf16 activations + MXU inputs end-to-end (v6e/v7x fast path);
    #     softmax / LayerNorm / accumulation stay f32.
    out = jax.block_until_ready(
        transformer_layer(0, query, keyx, values, params, n_heads=H,
                          compute_dtype=jnp.bfloat16))
    ref = reference(0, query, keyx, values, params, n_heads=H)
    assert jnp.allclose(out, ref, atol=TOL_BF16, rtol=TOL_BF16), \
        f"bf16 mismatch: {jnp.max(jnp.abs(out - ref))}"

    # (5) fused self-attention + bf16.
    out = jax.block_until_ready(
        transformer_layer(1, query, query, query, params, n_heads=H,
                          compute_dtype=jnp.bfloat16))
    ref = reference(1, query, query, query, params, n_heads=H)
    assert jnp.allclose(out, ref, atol=TOL_BF16, rtol=TOL_BF16), \
        f"fused bf16 mismatch: {jnp.max(jnp.abs(out - ref))}"

    # TODO(synk): dropout layers are modeled as identity (eval mode); training-mode
    # dropout would use pltpu.prng_seed / pltpu.prng_random_bits.
    print("KERNEL_OK")
</pallas_src>

<mosaic_0001>
module attributes {stable_mosaic.version = 11 : i64} {
  func.func @_tl_kernel(%arg0: i32, %arg1: memref<16x32xf32, #tpu.memory_space<vmem>>, %arg2: memref<16x32xf32, #tpu.memory_space<vmem>>, %arg3: memref<16x32xf32, #tpu.memory_space<vmem>>, %arg4: memref<32x96xf32, #tpu.memory_space<vmem>>, %arg5: memref<32x32xf32, #tpu.memory_space<vmem>>, %arg6: memref<32x64xf32, #tpu.memory_space<vmem>>, %arg7: memref<64x32xf32, #tpu.memory_space<vmem>>, %arg8: memref<10x64xf32, #tpu.memory_space<vmem>>, %arg9: memref<16x32xf32, #tpu.memory_space<vmem>>, %arg10: memref<16x32xf32, #tpu.memory_space<vmem>>) attributes {dimension_semantics = [#tpu.dimension_semantics<parallel>], iteration_bounds = array<i64: 1>, scalar_prefetch = 0 : i64, scratch_operands = 1 : i64, tpu.core_type = #tpu.core_type<tc>, window_params = [{transform_indices = @transform_0, window_bounds = array<i64: 16, 32>}, {transform_indices = @transform_1, window_bounds = array<i64: 16, 32>}, {transform_indices = @transform_2, window_bounds = array<i64: 16, 32>}, {pipeline_mode = #tpu.pipeline_mode<synchronous>, transform_indices = @transform_3, window_bounds = array<i64: 32, 96>}, {pipeline_mode = #tpu.pipeline_mode<synchronous>, transform_indices = @transform_4, window_bounds = array<i64: 32, 32>}, {pipeline_mode = #tpu.pipeline_mode<synchronous>, transform_indices = @transform_5, window_bounds = array<i64: 32, 64>}, {pipeline_mode = #tpu.pipeline_mode<synchronous>, transform_indices = @transform_6, window_bounds = array<i64: 64, 32>}, {pipeline_mode = #tpu.pipeline_mode<synchronous>, transform_indices = @transform_7, window_bounds = array<i64: 10, 64>}, {transform_indices = @transform_8, window_bounds = array<i64: 16, 32>}]} {
    %c0 = arith.constant 0 : index
    %c0_0 = arith.constant 0 : index
    %0 = vector.load %arg8[%c0, %c0_0] : memref<10x64xf32, #tpu.memory_space<vmem>>, vector<1x32xf32>
    %c1 = arith.constant 1 : index
    %c0_1 = arith.constant 0 : index
    %1 = vector.load %arg8[%c1, %c0_1] : memref<10x64xf32, #tpu.memory_space<vmem>>, vector<1x32xf32>
    %c2 = arith.constant 2 : index
    %c0_2 = arith.constant 0 : index
    %2 = vector.load %arg8[%c2, %c0_2] : memref<10x64xf32, #tpu.memory_space<vmem>>, vector<1x32xf32>
    %c3 = arith.constant 3 : index
    %c0_3 = arith.constant 0 : index
    %3 = vector.load %arg8[%c3, %c0_3] : memref<10x64xf32, #tpu.memory_space<vmem>>, vector<1x32xf32>
    %c4 = arith.constant 4 : index
    %c0_4 = arith.constant 0 : index
    %4 = vector.load %arg8[%c4, %c0_4] : memref<10x64xf32, #tpu.memory_space<vmem>>, vector<1x64xf32>
    %c5 = arith.constant 5 : index
    %c0_5 = arith.constant 0 : index
    %5 = vector.load %arg8[%c5, %c0_5] : memref<10x64xf32, #tpu.memory_space<vmem>>, vector<1x32xf32>
    %c6 = arith.constant 6 : index
    %c0_6 = arith.constant 0 : index
    %6 = vector.load %arg8[%c6, %c0_6] : memref<10x64xf32, #tpu.memory_space<vmem>>, vector<1x32xf32>
    %c7 = arith.constant 7 : index
    %c0_7 = arith.constant 0 : index
    %7 = vector.load %arg8[%c7, %c0_7] : memref<10x64xf32, #tpu.memory_space<vmem>>, vector<1x32xf32>
    %c8 = arith.constant 8 : index
    %c0_8 = arith.constant 0 : index
    %8 = vector.load %arg8[%c8, %c0_8] : memref<10x64xf32, #tpu.memory_space<vmem>>, vector<1x32xf32>
    %c9 = arith.constant 9 : index
    %c0_9 = arith.constant 0 : index
    %9 = vector.load %arg8[%c9, %c0_9] : memref<10x64xf32, #tpu.memory_space<vmem>>, vector<1x32xf32>
    %c0_10 = arith.constant 0 : index
    %c0_11 = arith.constant 0 : index
    %10 = vector.load %arg1[%c0_10, %c0_11] : memref<16x32xf32, #tpu.memory_space<vmem>>, vector<16x32xf32>
    %c0_12 = arith.constant 0 : index
    %c0_13 = arith.constant 0 : index
    %11 = vector.load %arg4[%c0_12, %c0_13] : memref<32x96xf32, #tpu.memory_space<vmem>>, vector<32x32xf32>
    %cst = arith.constant dense<0.000000e+00> : vector<16x32xf32>
    %12 = tpu.matmul %10, %11, %cst {dimension_numbers = #tpu.dot_dimension_numbers<[1], [0], [0], [1], [0, 0, 1, 1], [], []>} : vector<16x32xf32>, vector<32x32xf32>, vector<16x32xf32> -> vector<16x32xf32>
    %13 = vector.broadcast %0 : vector<1x32xf32> to vector<16x32xf32>
    %14 = arith.addf %12, %13 : vector<16x32xf32>
    %c0_14 = arith.constant 0 : index
    %c0_15 = arith.constant 0 : index
    %15 = vector.load %arg2[%c0_14, %c0_15] : memref<16x32xf32, #tpu.memory_space<vmem>>, vector<16x32xf32>
    %c0_16 = arith.constant 0 : index
    %c32 = arith.constant 32 : index
    %16 = vector.load %arg4[%c0_16, %c32] : memref<32x96xf32, #tpu.memory_space<vmem>>, vector<32x32xf32>
    %cst_17 = arith.constant dense<0.000000e+00> : vector<16x32xf32>
    %17 = tpu.matmul %15, %16, %cst_17 {dimension_numbers = #tpu.dot_dimension_numbers<[1], [0], [0], [1], [0, 0, 1, 1], [], []>} : vector<16x32xf32>, vector<32x32xf32>, vector<16x32xf32> -> vector<16x32xf32>
    %18 = vector.broadcast %1 : vector<1x32xf32> to vector<16x32xf32>
    %19 = arith.addf %17, %18 : vector<16x32xf32>
    %c0_18 = arith.constant 0 : index
    %c0_19 = arith.constant 0 : index
    %20 = vector.load %arg3[%c0_18, %c0_19] : memref<16x32xf32, #tpu.memory_space<vmem>>, vector<16x32xf32>
    %c0_20 = arith.constant 0 : index
    %c64 = arith.constant 64 : index
    %21 = vector.load %arg4[%c0_20, %c64] : memref<32x96xf32, #tpu.memory_space<vmem>>, vector<32x32xf32>
    %cst_21 = arith.constant dense<0.000000e+00> : vector<16x32xf32>
    %22 = tpu.matmul %20, %21, %cst_21 {dimension_numbers = #tpu.dot_dimension_numbers<[1], [0], [0], [1], [0, 0, 1, 1], [], []>} : vector<16x32xf32>, vector<32x32xf32>, vector<16x32xf32> -> vector<16x32xf32>
    %23 = vector.broadcast %2 : vector<1x32xf32> to vector<16x32xf32>
    %24 = arith.addf %22, %23 : vector<16x32xf32>
    %cst_22 = arith.constant 2.500000e-01 : f32
    %25 = vector.broadcast %cst_22 : f32 to vector<16x32xf32>
    %26 = arith.mulf %14, %25 : vector<16x32xf32>
    %27 = vector.shape_cast %26 : vector<16x32xf32> to vector<2x8x32xf32>
    %28 = vector.shape_cast %19 : vector<16x32xf32> to vector<2x8x32xf32>
    %29 = vector.shape_cast %24 : vector<16x32xf32> to vector<2x8x32xf32>
    %30 = tpu.iota {dimensions = array<i32: 0>} : vector<8x8xi32>
    %31 = tpu.iota {dimensions = array<i32: 1>} : vector<8x8xi32>
    %32 = arith.cmpi slt, %31, %30 : vector<8x8xi32>
    %33 = vector.extract_strided_slice %27 {offsets = [0, 0, 0], sizes = [2, 8, 16], strides = [1, 1, 1]} : vector<2x8x32xf32> to vector<2x8x16xf32>
    %34 = vector.extract_strided_slice %28 {offsets = [0, 0, 0], sizes = [2, 8, 16], strides = [1, 1, 1]} : vector<2x8x32xf32> to vector<2x8x16xf32>
    %35 = vector.extract_strided_slice %29 {offsets = [0, 0, 0], sizes = [2, 8, 16], strides = [1, 1, 1]} : vector<2x8x32xf32> to vector<2x8x16xf32>
    "tpu.trace_start"() <{level = 10 : i32, message = "bsd,btd->bst"}> : () -> ()
    %cst_23 = arith.constant dense<0.000000e+00> : vector<2x8x8xf32>
    %36 = tpu.matmul %33, %34, %cst_23 {dimension_numbers = #tpu.dot_dimension_numbers<[2], [2], [1], [1], [0, 0, 0, 1, 1, 1], [0], [0]>} : vector<2x8x16xf32>, vector<2x8x16xf32>, vector<2x8x8xf32> -> vector<2x8x8xf32>
    %cst_24 = arith.constant -1.000000e+32 : f32
    "tpu.trace_stop"() : () -> ()
    %37 = vector.shape_cast %32 : vector<8x8xi1> to vector<1x8x8xi1>
    %38 = vector.broadcast %37 : vector<1x8x8xi1> to vector<2x8x8xi1>
    %39 = vector.broadcast %cst_24 : f32 to vector<2x8x8xf32>
    %40 = arith.select %38, %36, %39 : vector<2x8x8xi1>, vector<2x8x8xf32>
    %cst_25 = arith.constant dense<0xFF800000> : vector<2x8xf32>
    %41 = vector.multi_reduction <maximumf>, %40, %cst_25 [2] : vector<2x8x8xf32> to vector<2x8xf32>
    %42 = vector.shape_cast %41 : vector<2x8xf32> to vector<2x8x1xf32>
    %43 = vector.broadcast %42 : vector<2x8x1xf32> to vector<2x8x8xf32>
    %44 = arith.subf %40, %43 : vector<2x8x8xf32>
    %45 = math.exp %44 : vector<2x8x8xf32>
    %cst_26 = arith.constant dense<0.000000e+00> : vector<2x8xf32>
    %46 = vector.multi_reduction <add>, %45, %cst_26 [2] : vector<2x8x8xf32> to vector<2x8xf32>
    %47 = vector.shape_cast %46 : vector<2x8xf32> to vector<2x8x1xf32>
    %48 = tpu.reciprocal %47 {approx = true} : vector<2x8x1xf32> -> vector<2x8x1xf32>
    %49 = vector.broadcast %48 : vector<2x8x1xf32> to vector<2x8x8xf32>
    %50 = arith.mulf %45, %49 : vector<2x8x8xf32>
    "tpu.trace_start"() <{level = 10 : i32, message = "bst,btd->bsd"}> : () -> ()
    %cst_27 = arith.constant dense<0.000000e+00> : vector<2x8x16xf32>
    %51 = tpu.matmul %50, %35, %cst_27 {dimension_numbers = #tpu.dot_dimension_numbers<[2], [1], [1], [2], [0, 0, 0, 1, 1, 2], [0], [0]>} : vector<2x8x8xf32>, vector<2x8x16xf32>, vector<2x8x16xf32> -> vector<2x8x16xf32>
    "tpu.trace_stop"() : () -> ()
    %52 = vector.shape_cast %51 : vector<2x8x16xf32> to vector<16x16xf32>
    %c0_28 = arith.constant 0 : index
    %c0_29 = arith.constant 0 : index
    %53 = vector.load %arg10[%c0_28, %c0_29] : memref<16x32xf32, #tpu.memory_space<vmem>>, vector<16x16xf32>
    tpu.vector_store %arg10[%c0_28, %c0_29], %52 {strides = array<i32>} : memref<16x32xf32, #tpu.memory_space<vmem>>, vector<16x16xf32>,
    %54 = vector.extract_strided_slice %27 {offsets = [0, 0, 16], sizes = [2, 8, 16], strides = [1, 1, 1]} : vector<2x8x32xf32> to vector<2x8x16xf32>
    %55 = vector.extract_strided_slice %28 {offsets = [0, 0, 16], sizes = [2, 8, 16], strides = [1, 1, 1]} : vector<2x8x32xf32> to vector<2x8x16xf32>
    %56 = vector.extract_strided_slice %29 {offsets = [0, 0, 16], sizes = [2, 8, 16], strides = [1, 1, 1]} : vector<2x8x32xf32> to vector<2x8x16xf32>
    "tpu.trace_start"() <{level = 10 : i32, message = "bsd,btd->bst"}> : () -> ()
    %cst_30 = arith.constant dense<0.000000e+00> : vector<2x8x8xf32>
    %57 = tpu.matmul %54, %55, %cst_30 {dimension_numbers = #tpu.dot_dimension_numbers<[2], [2], [1], [1], [0, 0, 0, 1, 1, 1], [0], [0]>} : vector<2x8x16xf32>, vector<2x8x16xf32>, vector<2x8x8xf32> -> vector<2x8x8xf32>
    %cst_31 = arith.constant -1.000000e+32 : f32
    "tpu.trace_stop"() : () -> ()
    %58 = vector.shape_cast %32 : vector<8x8xi1> to vector<1x8x8xi1>
    %59 = vector.broadcast %58 : vector<1x8x8xi1> to vector<2x8x8xi1>
    %60 = vector.broadcast %cst_31 : f32 to vector<2x8x8xf32>
    %61 = arith.select %59, %57, %60 : vector<2x8x8xi1>, vector<2x8x8xf32>
    %cst_32 = arith.constant dense<0xFF800000> : vector<2x8xf32>
    %62 = vector.multi_reduction <maximumf>, %61, %cst_32 [2] : vector<2x8x8xf32> to vector<2x8xf32>
    %63 = vector.shape_cast %62 : vector<2x8xf32> to vector<2x8x1xf32>
    %64 = vector.broadcast %63 : vector<2x8x1xf32> to vector<2x8x8xf32>
    %65 = arith.subf %61, %64 : vector<2x8x8xf32>
    %66 = math.exp %65 : vector<2x8x8xf32>
    %cst_33 = arith.constant dense<0.000000e+00> : vector<2x8xf32>
    %67 = vector.multi_reduction <add>, %66, %cst_33 [2] : vector<2x8x8xf32> to vector<2x8xf32>
    %68 = vector.shape_cast %67 : vector<2x8xf32> to vector<2x8x1xf32>
    %69 = tpu.reciprocal %68 {approx = true} : vector<2x8x1xf32> -> vector<2x8x1xf32>
    %70 = vector.broadcast %69 : vector<2x8x1xf32> to vector<2x8x8xf32>
    %71 = arith.mulf %66, %70 : vector<2x8x8xf32>
    "tpu.trace_start"() <{level = 10 : i32, message = "bst,btd->bsd"}> : () -> ()
    %cst_34 = arith.constant dense<0.000000e+00> : vector<2x8x16xf32>
    %72 = tpu.matmul %71, %56, %cst_34 {dimension_numbers = #tpu.dot_dimension_numbers<[2], [1], [1], [2], [0, 0, 0, 1, 1, 2], [0], [0]>} : vector<2x8x8xf32>, vector<2x8x16xf32>, vector<2x8x16xf32> -> vector<2x8x16xf32>
    "tpu.trace_stop"() : () -> ()
    %73 = vector.shape_cast %72 : vector<2x8x16xf32> to vector<16x16xf32>
    %c0_35 = arith.constant 0 : index
    %c16 = arith.constant 16 : index
    %74 = vector.load %arg10[%c0_35, %c16] : memref<16x32xf32, #tpu.memory_space<vmem>>, vector<16x16xf32>
    tpu.vector_store %arg10[%c0_35, %c16], %73 {strides = array<i32>} : memref<16x32xf32, #tpu.memory_space<vmem>>, vector<16x16xf32>,
    %c0_36 = arith.constant 0 : index
    %c0_37 = arith.constant 0 : index
    %75 = vector.load %arg10[%c0_36, %c0_37] : memref<16x32xf32, #tpu.memory_space<vmem>>, vector<16x32xf32>
    %c0_38 = arith.constant 0 : index
    %c0_39 = arith.constant 0 : index
    %76 = vector.load %arg5[%c0_38, %c0_39] : memref<32x32xf32, #tpu.memory_space<vmem>>, vector<32x32xf32>
    %cst_40 = arith.constant dense<0.000000e+00> : vector<16x32xf32>
    %77 = tpu.matmul %75, %76, %cst_40 {dimension_numbers = #tpu.dot_dimension_numbers<[1], [0], [0], [1], [0, 0, 1, 1], [], []>} : vector<16x32xf32>, vector<32x32xf32>, vector<16x32xf32> -> vector<16x32xf32>
    %78 = tpu.iota {dimensions = array<i32: 1>} : vector<2x8x1xi32>
    %79 = vector.shape_cast %78 : vector<2x8x1xi32> to vector<16x1xi32>
    %c0_i32 = arith.constant 0 : i32
    %80 = vector.broadcast %c0_i32 : i32 to vector<16x1xi32>
    %81 = arith.cmpi eq, %79, %80 : vector<16x1xi32>
    %cst_41 = arith.constant 0.000000e+00 : f32
    %82 = vector.shape_cast %81 : vector<16x1xi1> to vector<16x1xi1>
    %83 = vector.broadcast %82 : vector<16x1xi1> to vector<16x32xi1>
    %84 = vector.broadcast %cst_41 : f32 to vector<16x32xf32>
    %85 = arith.select %83, %84, %77 : vector<16x32xi1>, vector<16x32xf32>
    %86 = vector.broadcast %3 : vector<1x32xf32> to vector<16x32xf32>
    %87 = arith.addf %85, %86 : vector<16x32xf32>
    %88 = arith.addf %10, %87 : vector<16x32xf32>
    %cst_42 = arith.constant dense<0.000000e+00> : vector<16xf32>
    %89 = vector.multi_reduction <add>, %88, %cst_42 [1] : vector<16x32xf32> to vector<16xf32>
    %90 = vector.shape_cast %89 : vector<16xf32> to vector<16x1xf32>
    %cst_43 = arith.constant 3.200000e+01 : f32
    %91 = vector.broadcast %cst_43 : f32 to vector<16x1xf32>
    %92 = arith.divf %90, %91 : vector<16x1xf32>
    %93 = vector.broadcast %92 : vector<16x1xf32> to vector<16x32xf32>
    %94 = arith.subf %88, %93 : vector<16x32xf32>
    %95 = arith.mulf %94, %94 : vector<16x32xf32>
    %cst_44 = arith.constant dense<0.000000e+00> : vector<16xf32>
    %96 = vector.multi_reduction <add>, %95, %cst_44 [1] : vector<16x32xf32> to vector<16xf32>
    %97 = vector.shape_cast %96 : vector<16xf32> to vector<16x1xf32>
    %cst_45 = arith.constant 3.200000e+01 : f32
    %98 = vector.broadcast %cst_45 : f32 to vector<16x1xf32>
    %99 = arith.divf %97, %98 : vector<16x1xf32>
    %100 = vector.broadcast %92 : vector<16x1xf32> to vector<16x32xf32>
    %101 = arith.subf %88, %100 : vector<16x32xf32>
    %cst_46 = arith.constant 9.99999974E-6 : f32
    %102 = vector.broadcast %cst_46 : f32 to vector<16x1xf32>
    %103 = arith.addf %99, %102 : vector<16x1xf32>
    %104 = math.rsqrt %103 : vector<16x1xf32>
    %105 = vector.broadcast %104 : vector<16x1xf32> to vector<16x32xf32>
    %106 = arith.mulf %101, %105 : vector<16x32xf32>
    %107 = vector.broadcast %6 : vector<1x32xf32> to vector<16x32xf32>
    %108 = arith.mulf %106, %107 : vector<16x32xf32>
    %109 = vector.broadcast %7 : vector<1x32xf32> to vector<16x32xf32>
    %110 = arith.addf %108, %109 : vector<16x32xf32>
    %c0_47 = arith.constant 0 : index
    %c0_48 = arith.constant 0 : index
    %111 = vector.load %arg6[%c0_47, %c0_48] : memref<32x64xf32, #tpu.memory_space<vmem>>, vector<32x64xf32>
    %cst_49 = arith.constant dense<0.000000e+00> : vector<16x64xf32>
    %112 = tpu.matmul %110, %111, %cst_49 {dimension_numbers = #tpu.dot_dimension_numbers<[1], [0], [0], [1], [0, 0, 1, 1], [], []>} : vector<16x32xf32>, vector<32x64xf32>, vector<16x64xf32> -> vector<16x64xf32>
    %113 = vector.broadcast %4 : vector<1x64xf32> to vector<16x64xf32>
    %114 = arith.addf %112, %113 : vector<16x64xf32>
    %cst_50 = arith.constant 0.000000e+00 : f32
    %115 = vector.broadcast %cst_50 : f32 to vector<16x64xf32>
    %116 = arith.maximumf %114, %115 : vector<16x64xf32>
    %c0_51 = arith.constant 0 : index
    %c0_52 = arith.constant 0 : index
    %117 = vector.load %arg7[%c0_51, %c0_52] : memref<64x32xf32, #tpu.memory_space<vmem>>, vector<64x32xf32>
    %cst_53 = arith.constant dense<0.000000e+00> : vector<16x32xf32>
    %118 = tpu.matmul %116, %117, %cst_53 {dimension_numbers = #tpu.dot_dimension_numbers<[1], [0], [0], [1], [0, 0, 1, 1], [], []>} : vector<16x64xf32>, vector<64x32xf32>, vector<16x32xf32> -> vector<16x32xf32>
    %119 = vector.broadcast %5 : vector<1x32xf32> to vector<16x32xf32>
    %120 = arith.addf %118, %119 : vector<16x32xf32>
    %121 = arith.addf %110, %120 : vector<16x32xf32>
    %cst_54 = arith.constant dense<0.000000e+00> : vector<16xf32>
    %122 = vector.multi_reduction <add>, %121, %cst_54 [1] : vector<16x32xf32> to vector<16xf32>
    %123 = vector.shape_cast %122 : vector<16xf32> to vector<16x1xf32>
    %cst_55 = arith.constant 3.200000e+01 : f32
    %124 = vector.broadcast %cst_55 : f32 to vector<16x1xf32>
    %125 = arith.divf %123, %124 : vector<16x1xf32>
    %126 = vector.broadcast %125 : vector<16x1xf32> to vector<16x32xf32>
    %127 = arith.subf %121, %126 : vector<16x32xf32>
    %128 = arith.mulf %127, %127 : vector<16x32xf32>
    %cst_56 = arith.constant dense<0.000000e+00> : vector<16xf32>
    %129 = vector.multi_reduction <add>, %128, %cst_56 [1] : vector<16x32xf32> to vector<16xf32>
    %130 = vector.shape_cast %129 : vector<16xf32> to vector<16x1xf32>
    %cst_57 = arith.constant 3.200000e+01 : f32
    %131 = vector.broadcast %cst_57 : f32 to vector<16x1xf32>
    %132 = arith.divf %130, %131 : vector<16x1xf32>
    %133 = vector.broadcast %125 : vector<16x1xf32> to vector<16x32xf32>
    %134 = arith.subf %121, %133 : vector<16x32xf32>
    %cst_58 = arith.constant 9.99999974E-6 : f32
    %135 = vector.broadcast %cst_58 : f32 to vector<16x1xf32>
    %136 = arith.addf %132, %135 : vector<16x1xf32>
    %137 = math.rsqrt %136 : vector<16x1xf32>
    %138 = vector.broadcast %137 : vector<16x1xf32> to vector<16x32xf32>
    %139 = arith.mulf %134, %138 : vector<16x32xf32>
    %140 = vector.broadcast %8 : vector<1x32xf32> to vector<16x32xf32>
    %141 = arith.mulf %139, %140 : vector<16x32xf32>
    %142 = vector.broadcast %9 : vector<1x32xf32> to vector<16x32xf32>
    %143 = arith.addf %141, %142 : vector<16x32xf32>
    %c0_59 = arith.constant 0 : index
    %c0_60 = arith.constant 0 : index
    %144 = vector.load %arg9[%c0_59, %c0_60] : memref<16x32xf32, #tpu.memory_space<vmem>>, vector<16x32xf32>
    tpu.vector_store %arg9[%c0_59, %c0_60], %143 {strides = array<i32>} : memref<16x32xf32, #tpu.memory_space<vmem>>, vector<16x32xf32>,
    return
  }
  func.func @transform_0(%arg0: i32) -> (i32, i32) {
    %c0_i32 = arith.constant 0 : i32
    %c0_i32_0 = arith.constant 0 : i32
    return %arg0, %c0_i32 : i32, i32
  }
  func.func @transform_1(%arg0: i32) -> (i32, i32) {
    %c0_i32 = arith.constant 0 : i32
    %c0_i32_0 = arith.constant 0 : i32
    return %arg0, %c0_i32 : i32, i32
  }
  func.func @transform_2(%arg0: i32) -> (i32, i32) {
    %c0_i32 = arith.constant 0 : i32
    %c0_i32_0 = arith.constant 0 : i32
    return %arg0, %c0_i32 : i32, i32
  }
  func.func @transform_3(%arg0: i32) -> (i32, i32) {
    %c0_i32 = arith.constant 0 : i32
    %c0_i32_0 = arith.constant 0 : i32
    %c0_i32_1 = arith.constant 0 : i32
    return %c0_i32, %c0_i32_0 : i32, i32
  }
  func.func @transform_4(%arg0: i32) -> (i32, i32) {
    %c0_i32 = arith.constant 0 : i32
    %c0_i32_0 = arith.constant 0 : i32
    %c0_i32_1 = arith.constant 0 : i32
    return %c0_i32, %c0_i32_0 : i32, i32
  }
  func.func @transform_5(%arg0: i32) -> (i32, i32) {
    %c0_i32 = arith.constant 0 : i32
    %c0_i32_0 = arith.constant 0 : i32
    %c0_i32_1 = arith.constant 0 : i32
    return %c0_i32, %c0_i32_0 : i32, i32
  }
  func.func @transform_6(%arg0: i32) -> (i32, i32) {
    %c0_i32 = arith.constant 0 : i32
    %c0_i32_0 = arith.constant 0 : i32
    %c0_i32_1 = arith.constant 0 : i32
    return %c0_i32, %c0_i32_0 : i32, i32
  }
  func.func @transform_7(%arg0: i32) -> (i32, i32) {
    %c0_i32 = arith.constant 0 : i32
    %c0_i32_0 = arith.constant 0 : i32
    %c0_i32_1 = arith.constant 0 : i32
    return %c0_i32, %c0_i32_0 : i32, i32
  }
  func.func @transform_8(%arg0: i32) -> (i32, i32) {
    %c0_i32 = arith.constant 0 : i32
    %c0_i32_0 = arith.constant 0 : i32
    return %arg0, %c0_i32 : i32, i32
  }
}

</mosaic_0001>

<llo_original>
// kernel: tpu_custom_call.1
$region0: #{tpu_custom_call.1}
  #allocation0 [shape = 'u32[]', space=smem, size = 0x4, offset = 0x4, fixed_abs, tag = 'smem constant byte address 0x4 - core index']
  #allocation1 [shape = 'u32[144,128]{1,0:T(1,128)}', space=vmem, size = 0x12000, scoped, tag = 'internal scratch']
  #allocation2 [shape = 'f32[16,32]{1,0:T(8,128)}', space=vmem, size = 0x2000, scoped, tag = 'scratch operand']
  %s0 = inlined_call_operand.hbm [shape: f32[16,32], index: 0, kind: input, shape index: {}]
  %s1 = inlined_call_operand.hbm [shape: f32[16,32], index: 1, kind: input, shape index: {}]
  %s2 = inlined_call_operand.hbm [shape: f32[16,32], index: 2, kind: input, shape index: {}]
  %s3 = inlined_call_operand.vmem [shape: f32[32,96], index: 3, kind: input, shape index: {}]
  %s4 = inlined_call_operand.vmem [shape: f32[32,32], index: 4, kind: input, shape index: {}]
  %s5 = inlined_call_operand.vmem [shape: f32[32,64], index: 5, kind: input, shape index: {}]
  %s6 = inlined_call_operand.vmem [shape: f32[64,32], index: 6, kind: input, shape index: {}]
  %s7 = inlined_call_operand.vmem [shape: f32[10,64], index: 7, kind: input, shape index: {}]
  %s8 = inlined_call_operand.hbm [shape: f32[16,32], index: 8, kind: output, shape index: {}]
  %s9 = sld [smem:[#allocation0]]
  $region54: #{tpu_custom_call.1} parent=0
    _
  %s11 = ssub.s32 1, %s9
  %s12 = scalar_select 0, %s11, %s9
  $region1: #{tpu_custom_call.1} parent=0
    #allocation3 [shape = 'u8[8192]{0}', space=vmem, size = 0x2000, scoped, tag = 'input window, operand 0, single buffered']
    #allocation4 [shape = 's32[1]{0}', space=sflag, size = 0x4, scoped, tag = 'scoped memory for tpu_custom_call.1']
    #allocation5 [shape = 's32[1]{0}', space=sflag, size = 0x4, scoped, tag = 'scoped memory for tpu_custom_call.1']
    #allocation6 [shape = 'u8[8192]{0}', space=vmem, size = 0x2000, scoped, tag = 'input window, operand 1, single buffered']
    #allocation7 [shape = 's32[1]{0}', space=sflag, size = 0x4, scoped, tag = 'scoped memory for tpu_custom_call.1']
    #allocation8 [shape = 'u8[8192]{0}', space=vmem, size = 0x2000, scoped, tag = 'input window, operand 2, single buffered']
    #allocation9 [shape = 'u8[8192]{0}', space=vmem, size = 0x2000, scoped, tag = 'output window, operand 0, single buffered']
    %13 = vsyncpa [#allocation4], 0
    %14 = vsyncpa [#allocation7], 0
    %15 = vsyncpa [#allocation5], 0
    // Predicated region
    $region2: #{tpu_custom_call.1} parent=1 // pred_check
      _
    $region3: #{tpu_custom_call.1} parent=1 // pred_check_branch
      %17 = sbr.rel (0) target = $region5
    $region4: #{tpu_custom_call.1} parent=1 // pred_region
      %s19 = ssub.s32 256, 256
      %20 = vsyncadd [#allocation4], %s19
      %s21 = sshll.u32 [#allocation3], 4
      %s22 = int_to_ptr.vmem [resolvable:$true] %s21
      %27 = dma.hbm_to_vmem [thread:$0]  %s0, 256, %s22, [#allocation4], 128, 128, 8
    $region5: #{tpu_custom_call.1} parent=1 // pred_fallthru
      _
    // Predicated region
    $region6: #{tpu_custom_call.1} parent=1 // pred_check
      _
    $region7: #{tpu_custom_call.1} parent=1 // pred_check_branch
      %29 = sbr.rel (0) target = $region9
    $region8: #{tpu_custom_call.1} parent=1 // pred_region
      %s31 = ssub.s32 256, 256
      %32 = vsyncadd [#allocation7], %s31
      %s33 = sshll.u32 [#allocation6], 4
      %s34 = int_to_ptr.vmem [resolvable:$true] %s33
      %39 = dma.hbm_to_vmem [thread:$0]  %s1, 256, %s34, [#allocation7], 128, 128, 8
    $region9: #{tpu_custom_call.1} parent=1 // pred_fallthru
      _
    // Predicated region
    $region10: #{tpu_custom_call.1} parent=1 // pred_check
      _
    $region11: #{tpu_custom_call.1} parent=1 // pred_check_branch
      %41 = sbr.rel (0) target = $region13
    $region12: #{tpu_custom_call.1} parent=1 // pred_region
      %s43 = ssub.s32 256, 256
      %44 = vsyncadd [#allocation7], %s43
      %s45 = sshll.u32 [#allocation8], 4
      %s46 = int_to_ptr.vmem [resolvable:$true] %s45
      %51 = dma.hbm_to_vmem [thread:$0]  %s2, 256, %s46, [#allocation7], 128, 128, 8
    $region13: #{tpu_custom_call.1} parent=1 // pred_fallthru
      _
    // Predicated region
    $region14: #{tpu_custom_call.1} parent=1 // pred_check
      _
    $region15: #{tpu_custom_call.1} parent=1 // pred_check_branch
      %53 = sbr.rel (0) target = $region17
    $region16: #{tpu_custom_call.1} parent=1 // pred_region
      _
    $region17: #{tpu_custom_call.1} parent=1 // pred_fallthru
      _
    // Predicated region
    $region18: #{tpu_custom_call.1} parent=1 // pred_check
      _
    $region19: #{tpu_custom_call.1} parent=1 // pred_check_branch
      %55 = sbr.rel (0) target = $region21
    $region20: #{tpu_custom_call.1} parent=1 // pred_region
      _
    $region21: #{tpu_custom_call.1} parent=1 // pred_fallthru
      _
    // Predicated region
    $region22: #{tpu_custom_call.1} parent=1 // pred_check
      _
    $region23: #{tpu_custom_call.1} parent=1 // pred_check_branch
      %57 = sbr.rel (0) target = $region25
    $region24: #{tpu_custom_call.1} parent=1 // pred_region
      _
    $region25: #{tpu_custom_call.1} parent=1 // pred_fallthru
      _
    // Predicated region
    $region26: #{tpu_custom_call.1} parent=1 // pred_check
      _
    $region27: #{tpu_custom_call.1} parent=1 // pred_check_branch
      %59 = sbr.rel (0) target = $region29
    $region28: #{tpu_custom_call.1} parent=1 // pred_region
      _
    $region29: #{tpu_custom_call.1} parent=1 // pred_fallthru
      _
    // Predicated region
    $region30: #{tpu_custom_call.1} parent=1 // pred_check
      _
    $region31: #{tpu_custom_call.1} parent=1 // pred_check_branch
      %61 = sbr.rel (0) target = $region33
    $region32: #{tpu_custom_call.1} parent=1 // pred_region
      _
    $region33: #{tpu_custom_call.1} parent=1 // pred_fallthru
      _
    // Predicated region
    $region34: #{tpu_custom_call.1} parent=1 // pred_check
      _
    $region35: #{tpu_custom_call.1} parent=1 // pred_check_branch
      %63 = sbr.rel (0) target = $region37
    $region36: #{tpu_custom_call.1} parent=1 // pred_region
      %64 = dma.done [#allocation4], 256
    $region37: #{tpu_custom_call.1} parent=1 // pred_fallthru
      _
    // Predicated region
    $region38: #{tpu_custom_call.1} parent=1 // pred_check
      _
    $region39: #{tpu_custom_call.1} parent=1 // pred_check_branch
      %66 = sbr.rel (0) target = $region41
    $region40: #{tpu_custom_call.1} parent=1 // pred_region
      %67 = dma.done [#allocation7], 256
    $region41: #{tpu_custom_call.1} parent=1 // pred_fallthru
      _
    // Predicated region
    $region42: #{tpu_custom_call.1} parent=1 // pred_check
      _
    $region43: #{tpu_custom_call.1} parent=1 // pred_check_branch
      %69 = sbr.rel (0) target = $region45
    $region44: #{tpu_custom_call.1} parent=1 // pred_region
      %70 = dma.done [#allocation7], 256
    $region45: #{tpu_custom_call.1} parent=1 // pred_fallthru
      _
    %v71 = vld [vmem:[%s7] sm:$0x1]
    %v72 = vld [vmem:[%s7 + $0x1] sm:$0x1]
    %v73 = vld [vmem:[%s7 + $0x2] sm:$0x1]
    %v74 = vld [vmem:[%s7 + $0x3] sm:$0x1]
    %v75 = vld [vmem:[%s7 + $0x4] sm:$0x1]
    %v76 = vld [vmem:[%s7 + $0x5] sm:$0x1]
    %v77 = vld [vmem:[%s7 + $0x6] sm:$0x1]
    %v78 = vld [vmem:[%s7 + $0x7] sm:$0x1]
    %v79 = vld [vmem:[%s7 + $0x8] sm:$0x1]
    %v80 = vld [vmem:[%s7 + $0x9] sm:$0x1]
    %v81 = vld [vmem:[#allocation3] sm:$0xff]
    %v82 = vld [vmem:[#allocation3 + $0x8] sm:$0xff]
    %v83 = vld [vmem:[%s3] sm:$0xff]
    %v84 = vld [vmem:[%s3 + $0x8] sm:$0xff]
    %v85 = vld [vmem:[%s3 + $0x10] sm:$0xff]
    %v86 = vld [vmem:[%s3 + $0x18] sm:$0xff]
    %v87 = vlaneseq
    %v88 = vshrl.u32 %v87, 7
    %v89 = vsub.s32 0, %v88
    %v90 = vrot.slane %v71, %v89
    %vm91 = vcmask 261120
    %v93 = vsel %vm91, %v81, 0
    %v96 = vsel %vm91, %v82, 0
    %98 = vmatprep.subr.mxu0 0.0
    %99 = vmatpush1.msra.mxu0 %v83
    %100 = vmatprep.subr.mxu0 0.0
    %101 = vmatpush1.msra.mxu0 %v84
    %102 = vmatprep.subr.mxu0 0.0
    %103 = vmatpush1.msra.mxu0 %v85
    %104 = vmatprep.subr.mxu0 0.0
    %105 = vmatpush1.msra.mxu0 %v86
    %106 = vmatprep.subr.mxu0 0.0
    %107 = vmatpush1.msra.mxu0 0.0
    %108 = vmatprep.subr.mxu0 0.0
    %109 = vmatpush1.msra.mxu0 0.0
    %110 = vmatprep.subr.mxu0 0.0
    %111 = vmatpush1.msra.mxu0 0.0
    %112 = vmatprep.subr.mxu0 0.0
    %113 = vmatpush1.msra.mxu0 0.0
    %114 = vmatprep.subr.mxu0 0.0
    %115 = vmatpush1.msra.mxu0 0.0
    %116 = vmatprep.subr.mxu0 0.0
    %117 = vmatpush1.msra.mxu0 0.0
    %118 = vmatprep.subr.mxu0 0.0
    %119 = vmatpush1.msra.mxu0 0.0
    %120 = vmatprep.subr.mxu0 0.0
    %121 = vmatpush1.msra.mxu0 0.0
    %122 = vmatprep.subr.mxu0 0.0
    %123 = vmatpush1.msra.mxu0 0.0
    %124 = vmatprep.subr.mxu0 0.0
    %125 = vmatpush1.msra.mxu0 0.0
    %126 = vmatprep.subr.mxu0 0.0
    %127 = vmatpush1.msra.mxu0 0.0
    %128 = vmatprep.subr.mxu0 0.0
    %129 = vmatpush1.msra.mxu0 0.0
    %130 = vmatprep.subr.mxu0 0.0
    %131 = vmatpush1.msra.mxu0 0.0
    %132 = vmatprep.subr.mxu0 0.0
    %133 = vmatpush1.msra.mxu0 0.0
    %134 = vmatprep.subr.mxu0 0.0
    %135 = vmatpush1.msra.mxu0 0.0
    %136 = vmatprep.subr.mxu0 0.0
    %137 = vmatpush1.msra.mxu0 0.0
    %138 = vmatprep.subr.mxu0 0.0
    %139 = vmatpush1.msra.mxu0 0.0
    %140 = vmatprep.subr.mxu0 0.0
    %141 = vmatpush1.msra.mxu0 0.0
    %142 = vmatprep.subr.mxu0 0.0
    %143 = vmatpush1.msra.mxu0 0.0
    %144 = vmatprep.subr.mxu0 0.0
    %145 = vmatpush1.msra.mxu0 0.0
    %146 = vmatprep.subr.mxu0 0.0
    %147 = vmatpush1.msra.mxu0 0.0
    %148 = vmatprep.subr.mxu0 0.0
    %149 = vmatpush1.msra.mxu0 0.0
    %150 = vmatprep.subr.mxu0 0.0
    %151 = vmatpush1.msra.mxu0 0.0
    %152 = vmatprep.subr.mxu0 0.0
    %153 = vmatpush1.msra.mxu0 0.0
    %154 = vmatprep.subr.mxu0 0.0
    %155 = vmatpush1.msra.mxu0 0.0
    %156 = vmatprep.subr.mxu0 0.0
    %157 = vmatpush1.msra.mxu0 0.0
    %158 = vmatprep.subr.mxu0 0.0
    %159 = vmatpush1.msra.mxu0 0.0
    %160 = vmatprep.subr.mxu0 0.0
    %161 = vmatpush1.msra.mxu0 0.0
    %162 = vmatprep.mubr.f32.mxu0 0.0
    %163 = vmatmul.mubr.f32.gmra.mrb[0].mxu0 %v93
    %v164 = vpop.f32.mrb[0].mxu0
    %v165 = vadd.f32 %v90, %v164
    %v166 = vpop.f32.mrb[0].mxu0
    %167 = vmatprep.mubr.f32.mxu0 0.0
    %168 = vmatmul.mubr.f32.gmra.mrb[0].mxu0 %v96
    %v169 = vpop.f32.mrb[0].mxu0
    %v170 = vadd.f32 %v90, %v169
    %v171 = vpop.f32.mrb[0].mxu0
    %172 = vdwg.mxu0
    %v173 = vld [vmem:[#allocation6] sm:$0xff]
    %v174 = vld [vmem:[#allocation6 + $0x8] sm:$0xff]
    %v175 = vlaneseq
    %v176 = vshrl.u32 %v175, 7
    %v177 = vsub.s32 0, %v176
    %v178 = vrot.slane %v72, %v177
    %183 = vrot.lane.b32.xlu0 %v83, 96
    %v184 = vpop.permute.xlu0 %183
    %185 = vrot.lane.b32.xlu0 %v84, 96
    %v186 = vpop.permute.xlu0 %185
    %187 = vrot.lane.b32.xlu0 %v85, 96
    %v188 = vpop.permute.xlu0 %187
    %189 = vrot.lane.b32.xlu0 %v86, 96
    %v190 = vpop.permute.xlu0 %189
    %v196 = vsel %vm91, %v173, 0
    %v199 = vsel %vm91, %v174, 0
    %201 = vmatprep.subr.mxu0 0.0
    %202 = vmatpush1.msra.mxu0 %v184
    %203 = vmatprep.subr.mxu0 0.0
    %204 = vmatpush1.msra.mxu0 %v186
    %205 = vmatprep.subr.mxu0 0.0
    %206 = vmatpush1.msra.mxu0 %v188
    %207 = vmatprep.subr.mxu0 0.0
    %208 = vmatpush1.msra.mxu0 %v190
    %209 = vmatprep.subr.mxu0 0.0
    %210 = vmatpush1.msra.mxu0 0.0
    %211 = vmatprep.subr.mxu0 0.0
    %212 = vmatpush1.msra.mxu0 0.0
    %213 = vmatprep.subr.mxu0 0.0
    %214 = vmatpush1.msra.mxu0 0.0
    %215 = vmatprep.subr.mxu0 0.0
    %216 = vmatpush1.msra.mxu0 0.0
    %217 = vmatprep.subr.mxu0 0.0
    %218 = vmatpush1.msra.mxu0 0.0
    %219 = vmatprep.subr.mxu0 0.0
    %220 = vmatpush1.msra.mxu0 0.0
    %221 = vmatprep.subr.mxu0 0.0
    %222 = vmatpush1.msra.mxu0 0.0
    %223 = vmatprep.subr.mxu0 0.0
    %224 = vmatpush1.msra.mxu0 0.0
    %225 = vmatprep.subr.mxu0 0.0
    %226 = vmatpush1.msra.mxu0 0.0
    %227 = vmatprep.subr.mxu0 0.0
    %228 = vmatpush1.msra.mxu0 0.0
    %229 = vmatprep.subr.mxu0 0.0
    %230 = vmatpush1.msra.mxu0 0.0
    %231 = vmatprep.subr.mxu0 0.0
    %232 = vmatpush1.msra.mxu0 0.0
    %233 = vmatprep.subr.mxu0 0.0
    %234 = vmatpush1.msra.mxu0 0.0
    %235 = vmatprep.subr.mxu0 0.0
    %236 = vmatpush1.msra.mxu0 0.0
    %237 = vmatprep.subr.mxu0 0.0
    %238 = vmatpush1.msra.mxu0 0.0
    %239 = vmatprep.subr.mxu0 0.0
    %240 = vmatpush1.msra.mxu0 0.0
    %241 = vmatprep.subr.mxu0 0.0
    %242 = vmatpush1.msra.mxu0 0.0
    %243 = vmatprep.subr.mxu0 0.0
    %244 = vmatpush1.msra.mxu0 0.0
    %245 = vmatprep.subr.mxu0 0.0
    %246 = vmatpush1.msra.mxu0 0.0
    %247 = vmatprep.subr.mxu0 0.0
    %248 = vmatpush1.msra.mxu0 0.0
    %249 = vmatprep.subr.mxu0 0.0
    %250 = vmatpush1.msra.mxu0 0.0
    %251 = vmatprep.subr.mxu0 0.0
    %252 = vmatpush1.msra.mxu0 0.0
    %253 = vmatprep.subr.mxu0 0.0
    %254 = vmatpush1.msra.mxu0 0.0
    %255 = vmatprep.subr.mxu0 0.0
    %256 = vmatpush1.msra.mxu0 0.0
    %257 = vmatprep.subr.mxu0 0.0
    %258 = vmatpush1.msra.mxu0 0.0
    %259 = vmatprep.subr.mxu0 0.0
    %260 = vmatpush1.msra.mxu0 0.0
    %261 = vmatprep.subr.mxu0 0.0
    %262 = vmatpush1.msra.mxu0 0.0
    %263 = vmatprep.subr.mxu0 0.0
    %264 = vmatpush1.msra.mxu0 0.0
    %265 = vmatprep.mubr.f32.mxu0 0.0
    %266 = vmatmul.mubr.f32.gmra.mrb[0].mxu0 %v196
    %v267 = vpop.f32.mrb[0].mxu0
    %v268 = vadd.f32 %v178, %v267
    %v269 = vpop.f32.mrb[0].mxu0
    %270 = vmatprep.mubr.f32.mxu0 0.0
    %271 = vmatmul.mubr.f32.gmra.mrb[0].mxu0 %v199
    %v272 = vpop.f32.mrb[0].mxu0
    %v273 = vadd.f32 %v178, %v272
    %v274 = vpop.f32.mrb[0].mxu0
    %275 = vdwg.mxu0
    %v276 = vld [vmem:[#allocation8] sm:$0xff]
    %v277 = vld [vmem:[#allocation8 + $0x8] sm:$0xff]
    %v278 = vlaneseq
    %v279 = vshrl.u32 %v278, 7
    %v280 = vsub.s32 0, %v279
    %v281 = vrot.slane %v73, %v280
    %282 = vrot.lane.b32.xlu0 %v83, 64
    %v283 = vpop.permute.xlu0 %282
    %284 = vrot.lane.b32.xlu0 %v84, 64
    %v285 = vpop.permute.xlu0 %284
    %286 = vrot.lane.b32.xlu0 %v85, 64
    %v287 = vpop.permute.xlu0 %286
    %288 = vrot.lane.b32.xlu0 %v86, 64
    %v289 = vpop.permute.xlu0 %288
    %v295 = vsel %vm91, %v276, 0
    %v298 = vsel %vm91, %v277, 0
    %300 = vmatprep.subr.mxu0 0.0
    %301 = vmatpush1.msra.mxu0 %v283
    %302 = vmatprep.subr.mxu0 0.0
    %303 = vmatpush1.msra.mxu0 %v285
    %304 = vmatprep.subr.mxu0 0.0
    %305 = vmatpush1.msra.mxu0 %v287
    %306 = vmatprep.subr.mxu0 0.0
    %307 = vmatpush1.msra.mxu0 %v289
    %308 = vmatprep.subr.mxu0 0.0
    %309 = vmatpush1.msra.mxu0 0.0
    %310 = vmatprep.subr.mxu0 0.0
    %311 = vmatpush1.msra.mxu0 0.0
    %312 = vmatprep.subr.mxu0 0.0
    %313 = vmatpush1.msra.mxu0 0.0
    %314 = vmatprep.subr.mxu0 0.0
    %315 = vmatpush1.msra.mxu0 0.0
    %316 = vmatprep.subr.mxu0 0.0
    %317 = vmatpush1.msra.mxu0 0.0
    %318 = vmatprep.subr.mxu0 0.0
    %319 = vmatpush1.msra.mxu0 0.0
    %320 = vmatprep.subr.mxu0 0.0
    %321 = vmatpush1.msra.mxu0 0.0
    %322 = vmatprep.subr.mxu0 0.0
    %323 = vmatpush1.msra.mxu0 0.0
    %324 = vmatprep.subr.mxu0 0.0
    %325 = vmatpush1.msra.mxu0 0.0
    %326 = vmatprep.subr.mxu0 0.0
    %327 = vmatpush1.msra.mxu0 0.0
    %328 = vmatprep.subr.mxu0 0.0
    %329 = vmatpush1.msra.mxu0 0.0
    %330 = vmatprep.subr.mxu0 0.0
    %331 = vmatpush1.msra.mxu0 0.0
    %332 = vmatprep.subr.mxu0 0.0
    %333 = vmatpush1.msra.mxu0 0.0
    %334 = vmatprep.subr.mxu0 0.0
    %335 = vmatpush1.msra.mxu0 0.0
    %336 = vmatprep.subr.mxu0 0.0
    %337 = vmatpush1.msra.mxu0 0.0
    %338 = vmatprep.subr.mxu0 0.0
    %339 = vmatpush1.msra.mxu0 0.0
    %340 = vmatprep.subr.mxu0 0.0
    %341 = vmatpush1.msra.mxu0 0.0
    %342 = vmatprep.subr.mxu0 0.0
    %343 = vmatpush1.msra.mxu0 0.0
    %344 = vmatprep.subr.mxu0 0.0
    %345 = vmatpush1.msra.mxu0 0.0
    %346 = vmatprep.subr.mxu0 0.0
    %347 = vmatpush1.msra.mxu0 0.0
    %348 = vmatprep.subr.mxu0 0.0
    %349 = vmatpush1.msra.mxu0 0.0
    %350 = vmatprep.subr.mxu0 0.0
    %351 = vmatpush1.msra.mxu0 0.0
    %352 = vmatprep.subr.mxu0 0.0
    %353 = vmatpush1.msra.mxu0 0.0
    %354 = vmatprep.subr.mxu0 0.0
    %355 = vmatpush1.msra.mxu0 0.0
    %356 = vmatprep.subr.mxu0 0.0
    %357 = vmatpush1.msra.mxu0 0.0
    %358 = vmatprep.subr.mxu0 0.0
    %359 = vmatpush1.msra.mxu0 0.0
    %360 = vmatprep.subr.mxu0 0.0
    %361 = vmatpush1.msra.mxu0 0.0
    %362 = vmatprep.subr.mxu0 0.0
    %363 = vmatpush1.msra.mxu0 0.0
    %364 = vmatprep.mubr.f32.mxu0 0.0
    %365 = vmatmul.mubr.f32.gmra.mrb[0].mxu0 %v295
    %v366 = vpop.f32.mrb[0].mxu0
    %v367 = vadd.f32 %v281, %v366
    %v368 = vpop.f32.mrb[0].mxu0
    %369 = vmatprep.mubr.f32.mxu0 0.0
    %370 = vmatmul.mubr.f32.gmra.mrb[0].mxu0 %v298
    %v371 = vpop.f32.mrb[0].mxu0
    %v372 = vadd.f32 %v281, %v371
    %v373 = vpop.f32.mrb[0].mxu0
    %374 = vdwg.mxu0
    %v375 = vmul.f32 %v165, 0.25
    %v376 = vmul.f32 %v170, 0.25
    %v377 = vlaneseq
    %v378 = vshrl.u32 %v377, 7
    %v379 = vlaneseq
    %v380 = vand.u32 %v379, 127
    %vm381 = vcmp.lt.s32.totalorder %v380, %v378
    %vm382 = vcmask 130048
    %v384 = vsel %vm382, %v375, 0
    %v387 = vsel %vm382, %v268, 0
    %389 = vmatprep.subr.mxu0 0.0
    %390 = vmatpush1.xpose.msra.mxu0 %v387
    %391 = vmatprep.subr.mxu0 0.0
    %392 = vmatpush1.xpose.msra.mxu0 0.0
    %393 = vmatprep.subr.mxu0 0.0
    %394 = vmatpush1.xpose.msra.mxu0 0.0
    %395 = vmatprep.subr.mxu0 0.0
    %396 = vmatpush1.xpose.msra.mxu0 0.0
    %397 = vmatprep.subr.mxu0 0.0
    %398 = vmatpush1.xpose.msra.mxu0 0.0
    %399 = vmatprep.subr.mxu0 0.0
    %400 = vmatpush1.xpose.msra.mxu0 0.0
    %401 = vmatprep.subr.mxu0 0.0
    %402 = vmatpush1.xpose.msra.mxu0 0.0
    %403 = vmatprep.subr.mxu0 0.0
    %404 = vmatpush1.xpose.msra.mxu0 0.0
    %405 = vmatprep.subr.mxu0 0.0
    %406 = vmatpush1.xpose.msra.mxu0 0.0
    %407 = vmatprep.subr.mxu0 0.0
    %408 = vmatpush1.xpose.msra.mxu0 0.0
    %409 = vmatprep.subr.mxu0 0.0
    %410 = vmatpush1.xpose.msra.mxu0 0.0
    %411 = vmatprep.subr.mxu0 0.0
    %412 = vmatpush1.xpose.msra.mxu0 0.0
    %413 = vmatprep.subr.mxu0 0.0
    %414 = vmatpush1.xpose.msra.mxu0 0.0
    %415 = vmatprep.subr.mxu0 0.0
    %416 = vmatpush1.xpose.msra.mxu0 0.0
    %417 = vmatprep.subr.mxu0 0.0
    %418 = vmatpush1.xpose.msra.mxu0 0.0
    %419 = vmatprep.subr.mxu0 0.0
    %420 = vmatpush1.xpose.msra.mxu0 0.0
    %421 = vmatprep.subr.mxu0 0.0
    %422 = vmatpush1.xpose.msra.mxu0 0.0
    %423 = vmatprep.subr.mxu0 0.0
    %424 = vmatpush1.xpose.msra.mxu0 0.0
    %425 = vmatprep.subr.mxu0 0.0
    %426 = vmatpush1.xpose.msra.mxu0 0.0
    %427 = vmatprep.subr.mxu0 0.0
    %428 = vmatpush1.xpose.msra.mxu0 0.0
    %429 = vmatprep.subr.mxu0 0.0
    %430 = vmatpush1.xpose.msra.mxu0 0.0
    %431 = vmatprep.subr.mxu0 0.0
    %432 = vmatpush1.xpose.msra.mxu0 0.0
    %433 = vmatprep.subr.mxu0 0.0
    %434 = vmatpush1.xpose.msra.mxu0 0.0
    %435 = vmatprep.subr.mxu0 0.0
    %436 = vmatpush1.xpose.msra.mxu0 0.0
    %437 = vmatprep.subr.mxu0 0.0
    %438 = vmatpush1.xpose.msra.mxu0 0.0
    %439 = vmatprep.subr.mxu0 0.0
    %440 = vmatpush1.xpose.msra.mxu0 0.0
    %441 = vmatprep.subr.mxu0 0.0
    %442 = vmatpush1.xpose.msra.mxu0 0.0
    %443 = vmatprep.subr.mxu0 0.0
    %444 = vmatpush1.xpose.msra.mxu0 0.0
    %445 = vmatprep.subr.mxu0 0.0
    %446 = vmatpush1.xpose.msra.mxu0 0.0
    %447 = vmatprep.subr.mxu0 0.0
    %448 = vmatpush1.xpose.msra.mxu0 0.0
    %449 = vmatprep.subr.mxu0 0.0
    %450 = vmatpush1.xpose.msra.mxu0 0.0
    %451 = vmatprep.subr.mxu0 0.0
    %452 = vmatpush1.xpose.msra.mxu0 0.0
    %453 = vmatprep.mubr.f32.mxu0 0.0
    %454 = vmatmul.mubr.f32.gmra.mrb[0].mxu0 %v384
    %v455 = vpop.f32.mrb[0].mxu0
    %v456 = vadd.f32 0.0, %v455
    %v457 = vpop.f32.mrb[0].mxu0
    %458 = vdwg.mxu0
    %v460 = vsel %vm382, %v376, 0
    %v463 = vsel %vm382, %v273, 0
    %465 = vmatprep.subr.mxu0 0.0
    %466 = vmatpush1.xpose.msra.mxu0 %v463
    %467 = vmatprep.subr.mxu0 0.0
    %468 = vmatpush1.xpose.msra.mxu0 0.0
    %469 = vmatprep.subr.mxu0 0.0
    %470 = vmatpush1.xpose.msra.mxu0 0.0
    %471 = vmatprep.subr.mxu0 0.0
    %472 = vmatpush1.xpose.msra.mxu0 0.0
    %473 = vmatprep.subr.mxu0 0.0
    %474 = vmatpush1.xpose.msra.mxu0 0.0
    %475 = vmatprep.subr.mxu0 0.0
    %476 = vmatpush1.xpose.msra.mxu0 0.0
    %477 = vmatprep.subr.mxu0 0.0
    %478 = vmatpush1.xpose.msra.mxu0 0.0
    %479 = vmatprep.subr.mxu0 0.0
    %480 = vmatpush1.xpose.msra.mxu0 0.0
    %481 = vmatprep.subr.mxu0 0.0
    %482 = vmatpush1.xpose.msra.mxu0 0.0
    %483 = vmatprep.subr.mxu0 0.0
    %484 = vmatpush1.xpose.msra.mxu0 0.0
    %485 = vmatprep.subr.mxu0 0.0
    %486 = vmatpush1.xpose.msra.mxu0 0.0
    %487 = vmatprep.subr.mxu0 0.0
    %488 = vmatpush1.xpose.msra.mxu0 0.0
    %489 = vmatprep.subr.mxu0 0.0
    %490 = vmatpush1.xpose.msra.mxu0 0.0
    %491 = vmatprep.subr.mxu0 0.0
    %492 = vmatpush1.xpose.msra.mxu0 0.0
    %493 = vmatprep.subr.mxu0 0.0
    %494 = vmatpush1.xpose.msra.mxu0 0.0
    %495 = vmatprep.subr.mxu0 0.0
    %496 = vmatpush1.xpose.msra.mxu0 0.0
    %497 = vmatprep.subr.mxu0 0.0
    %498 = vmatpush1.xpose.msra.mxu0 0.0
    %499 = vmatprep.subr.mxu0 0.0
    %500 = vmatpush1.xpose.msra.mxu0 0.0
    %501 = vmatprep.subr.mxu0 0.0
    %502 = vmatpush1.xpose.msra.mxu0 0.0
    %503 = vmatprep.subr.mxu0 0.0
    %504 = vmatpush1.xpose.msra.mxu0 0.0
    %505 = vmatprep.subr.mxu0 0.0
    %506 = vmatpush1.xpose.msra.mxu0 0.0
    %507 = vmatprep.subr.mxu0 0.0
    %508 = vmatpush1.xpose.msra.mxu0 0.0
    %509 = vmatprep.subr.mxu0 0.0
    %510 = vmatpush1.xpose.msra.mxu0 0.0
    %511 = vmatprep.subr.mxu0 0.0
    %512 = vmatpush1.xpose.msra.mxu0 0.0
    %513 = vmatprep.subr.mxu0 0.0
    %514 = vmatpush1.xpose.msra.mxu0 0.0
    %515 = vmatprep.subr.mxu0 0.0
    %516 = vmatpush1.xpose.msra.mxu0 0.0
    %517 = vmatprep.subr.mxu0 0.0
    %518 = vmatpush1.xpose.msra.mxu0 0.0
    %519 = vmatprep.subr.mxu0 0.0
    %520 = vmatpush1.xpose.msra.mxu0 0.0
    %521 = vmatprep.subr.mxu0 0.0
    %522 = vmatpush1.xpose.msra.mxu0 0.0
    %523 = vmatprep.subr.mxu0 0.0
    %524 = vmatpush1.xpose.msra.mxu0 0.0
    %525 = vmatprep.subr.mxu0 0.0
    %526 = vmatpush1.xpose.msra.mxu0 0.0
    %527 = vmatprep.subr.mxu0 0.0
    %528 = vmatpush1.xpose.msra.mxu0 0.0
    %529 = vmatprep.mubr.f32.mxu0 0.0
    %530 = vmatmul.mubr.f32.gmra.mrb[0].mxu0 %v460
    %v531 = vpop.f32.mrb[0].mxu0
    %v532 = vadd.f32 0.0, %v531
    %v533 = vpop.f32.mrb[0].mxu0
    %534 = vdwg.mxu0
    %v535 = vsel %vm381, 1, 0
    %vm536 = vcmp.eq.s32.totalorder %v535, 1
    %v537 = vsel %vm536, %v456, -1e+32
    %v538 = vsel %vm536, %v532, -1e+32
    %vm539 = vcmask 64512
    %v540 = vsel %vm539, %v537, -inf
    %541 = vmax.xlane.f32.xlu0 %v540
    %v542 = vpop.xlane.xlu0 %541
    %v543 = vsel %vm539, %v538, -inf
    %544 = vmax.xlane.f32.xlu0 %v543
    %v545 = vpop.xlane.xlu0 %544
    %v546 = vsub.f32 %v537, %v542
    %v547 = vsub.f32 %v538, %v545
    %v548 = vmul.f32 %v546, 1.442695
    %v549 = vpow.pop %v548
    %v550 = vmul.f32 %v547, 1.442695
    %v551 = vpow.pop %v550
    %v552 = vsel %vm539, %v549, 0.0
    %553 = vadd.xlane.f32.xlu0 %v552
    %v554 = vpop.xlane.xlu0 %553
    %v555 = vsel %vm539, %v551, 0.0
    %556 = vadd.xlane.f32.xlu0 %v555
    %v557 = vpop.xlane.xlu0 %556
    %v558 = vrcp.pop %v554
    %v559 = vrcp.pop %v557
    %v560 = vmul.f32 %v549, %v558
    %v561 = vmul.f32 %v551, %v559
    %v563 = vsel %vm539, %v560, 0
    %565 = vmatprep.subr.mxu0 0.0
    %566 = vmatpush1.msra.mxu0 %v367
    %567 = vmatprep.subr.mxu0 0.0
    %568 = vmatpush1.msra.mxu0 0.0
    %569 = vmatprep.subr.mxu0 0.0
    %570 = vmatpush1.msra.mxu0 0.0
    %571 = vmatprep.subr.mxu0 0.0
    %572 = vmatpush1.msra.mxu0 0.0
    %573 = vmatprep.subr.mxu0 0.0
    %574 = vmatpush1.msra.mxu0 0.0
    %575 = vmatprep.subr.mxu0 0.0
    %576 = vmatpush1.msra.mxu0 0.0
    %577 = vmatprep.subr.mxu0 0.0
    %578 = vmatpush1.msra.mxu0 0.0
    %579 = vmatprep.subr.mxu0 0.0
    %580 = vmatpush1.msra.mxu0 0.0
    %581 = vmatprep.subr.mxu0 0.0
    %582 = vmatpush1.msra.mxu0 0.0
    %583 = vmatprep.subr.mxu0 0.0
    %584 = vmatpush1.msra.mxu0 0.0
    %585 = vmatprep.subr.mxu0 0.0
    %586 = vmatpush1.msra.mxu0 0.0
    %587 = vmatprep.subr.mxu0 0.0
    %588 = vmatpush1.msra.mxu0 0.0
    %589 = vmatprep.subr.mxu0 0.0
    %590 = vmatpush1.msra.mxu0 0.0
    %591 = vmatprep.subr.mxu0 0.0
    %592 = vmatpush1.msra.mxu0 0.0
    %593 = vmatprep.subr.mxu0 0.0
    %594 = vmatpush1.msra.mxu0 0.0
    %595 = vmatprep.subr.mxu0 0.0
    %596 = vmatpush1.msra.mxu0 0.0
    %597 = vmatprep.subr.mxu0 0.0
    %598 = vmatpush1.msra.mxu0 0.0
    %599 = vmatprep.subr.mxu0 0.0
    %600 = vmatpush1.msra.mxu0 0.0
    %601 = vmatprep.subr.mxu0 0.0
    %602 = vmatpush1.msra.mxu0 0.0
    %603 = vmatprep.subr.mxu0 0.0
    %604 = vmatpush1.msra.mxu0 0.0
    %605 = vmatprep.subr.mxu0 0.0
    %606 = vmatpush1.msra.mxu0 0.0
    %607 = vmatprep.subr.mxu0 0.0
    %608 = vmatpush1.msra.mxu0 0.0
    %609 = vmatprep.subr.mxu0 0.0
    %610 = vmatpush1.msra.mxu0 0.0
    %611 = vmatprep.subr.mxu0 0.0
    %612 = vmatpush1.msra.mxu0 0.0
    %613 = vmatprep.subr.mxu0 0.0
    %614 = vmatpush1.msra.mxu0 0.0
    %615 = vmatprep.subr.mxu0 0.0
    %616 = vmatpush1.msra.mxu0 0.0
    %617 = vmatprep.subr.mxu0 0.0
    %618 = vmatpush1.msra.mxu0 0.0
    %619 = vmatprep.subr.mxu0 0.0
    %620 = vmatpush1.msra.mxu0 0.0
    %621 = vmatprep.subr.mxu0 0.0
    %622 = vmatpush1.msra.mxu0 0.0
    %623 = vmatprep.subr.mxu0 0.0
    %624 = vmatpush1.msra.mxu0 0.0
    %625 = vmatprep.subr.mxu0 0.0
    %626 = vmatpush1.msra.mxu0 0.0
    %627 = vmatprep.subr.mxu0 0.0
    %628 = vmatpush1.msra.mxu0 0.0
    %629 = vmatprep.mubr.f32.mxu0 0.0
    %630 = vmatmul.mubr.f32.gmra.mrb[0].mxu0 %v563
    %v631 = vpop.f32.mrb[0].mxu0
    %v632 = vadd.f32 0.0, %v631
    %v633 = vpop.f32.mrb[0].mxu0
    %634 = vdwg.mxu0
    %v636 = vsel %vm539, %v561, 0
    %638 = vmatprep.subr.mxu0 0.0
    %639 = vmatpush1.msra.mxu0 %v372
    %640 = vmatprep.subr.mxu0 0.0
    %641 = vmatpush1.msra.mxu0 0.0
    %642 = vmatprep.subr.mxu0 0.0
    %643 = vmatpush1.msra.mxu0 0.0
    %644 = vmatprep.subr.mxu0 0.0
    %645 = vmatpush1.msra.mxu0 0.0
    %646 = vmatprep.subr.mxu0 0.0
    %647 = vmatpush1.msra.mxu0 0.0
    %648 = vmatprep.subr.mxu0 0.0
    %649 = vmatpush1.msra.mxu0 0.0
    %650 = vmatprep.subr.mxu0 0.0
    %651 = vmatpush1.msra.mxu0 0.0
    %652 = vmatprep.subr.mxu0 0.0
    %653 = vmatpush1.msra.mxu0 0.0
    %654 = vmatprep.subr.mxu0 0.0
    %655 = vmatpush1.msra.mxu0 0.0
    %656 = vmatprep.subr.mxu0 0.0
    %657 = vmatpush1.msra.mxu0 0.0
    %658 = vmatprep.subr.mxu0 0.0
    %659 = vmatpush1.msra.mxu0 0.0
    %660 = vmatprep.subr.mxu0 0.0
    %661 = vmatpush1.msra.mxu0 0.0
    %662 = vmatprep.subr.mxu0 0.0
    %663 = vmatpush1.msra.mxu0 0.0
    %664 = vmatprep.subr.mxu0 0.0
    %665 = vmatpush1.msra.mxu0 0.0
    %666 = vmatprep.subr.mxu0 0.0
    %667 = vmatpush1.msra.mxu0 0.0
    %668 = vmatprep.subr.mxu0 0.0
    %669 = vmatpush1.msra.mxu0 0.0
    %670 = vmatprep.subr.mxu0 0.0
    %671 = vmatpush1.msra.mxu0 0.0
    %672 = vmatprep.subr.mxu0 0.0
    %673 = vmatpush1.msra.mxu0 0.0
    %674 = vmatprep.subr.mxu0 0.0
    %675 = vmatpush1.msra.mxu0 0.0
    %676 = vmatprep.subr.mxu0 0.0
    %677 = vmatpush1.msra.mxu0 0.0
    %678 = vmatprep.subr.mxu0 0.0
    %679 = vmatpush1.msra.mxu0 0.0
    %680 = vmatprep.subr.mxu0 0.0
    %681 = vmatpush1.msra.mxu0 0.0
    %682 = vmatprep.subr.mxu0 0.0
    %683 = vmatpush1.msra.mxu0 0.0
    %684 = vmatprep.subr.mxu0 0.0
    %685 = vmatpush1.msra.mxu0 0.0
    %686 = vmatprep.subr.mxu0 0.0
    %687 = vmatpush1.msra.mxu0 0.0
    %688 = vmatprep.subr.mxu0 0.0
    %689 = vmatpush1.msra.mxu0 0.0
    %690 = vmatprep.subr.mxu0 0.0
    %691 = vmatpush1.msra.mxu0 0.0
    %692 = vmatprep.subr.mxu0 0.0
    %693 = vmatpush1.msra.mxu0 0.0
    %694 = vmatprep.subr.mxu0 0.0
    %695 = vmatpush1.msra.mxu0 0.0
    %696 = vmatprep.subr.mxu0 0.0
    %697 = vmatpush1.msra.mxu0 0.0
    %698 = vmatprep.subr.mxu0 0.0
    %699 = vmatpush1.msra.mxu0 0.0
    %700 = vmatprep.subr.mxu0 0.0
    %701 = vmatpush1.msra.mxu0 0.0
    %702 = vmatprep.mubr.f32.mxu0 0.0
    %703 = vmatmul.mubr.f32.gmra.mrb[0].mxu0 %v636
    %v704 = vpop.f32.mrb[0].mxu0
    %v705 = vadd.f32 0.0, %v704
    %v706 = vpop.f32.mrb[0].mxu0
    %707 = vdwg.mxu0
    %708 = vst.msk [vmem:[#allocation2] sm:$0xff] %vm382, %v632
    %709 = vst.msk [vmem:[#allocation2 + $0x8] sm:$0xff] %vm382, %v705
    %710 = vrot.lane.b32.xlu0 %v375, 112
    %v711 = vpop.permute.xlu0 %710
    %712 = vrot.lane.b32.xlu0 %v268, 112
    %v713 = vpop.permute.xlu0 %712
    %v714 = vsel %vm382, %v711, 0
    %v716 = vsel %vm382, %v713, 0
    %718 = vmatprep.subr.mxu0 0.0
    %719 = vmatpush1.xpose.msra.mxu0 %v716
    %720 = vmatprep.subr.mxu0 0.0
    %721 = vmatpush1.xpose.msra.mxu0 0.0
    %722 = vmatprep.subr.mxu0 0.0
    %723 = vmatpush1.xpose.msra.mxu0 0.0
    %724 = vmatprep.subr.mxu0 0.0
    %725 = vmatpush1.xpose.msra.mxu0 0.0
    %726 = vmatprep.subr.mxu0 0.0
    %727 = vmatpush1.xpose.msra.mxu0 0.0
    %728 = vmatprep.subr.mxu0 0.0
    %729 = vmatpush1.xpose.msra.mxu0 0.0
    %730 = vmatprep.subr.mxu0 0.0
    %731 = vmatpush1.xpose.msra.mxu0 0.0
    %732 = vmatprep.subr.mxu0 0.0
    %733 = vmatpush1.xpose.msra.mxu0 0.0
    %734 = vmatprep.subr.mxu0 0.0
    %735 = vmatpush1.xpose.msra.mxu0 0.0
    %736 = vmatprep.subr.mxu0 0.0
    %737 = vmatpush1.xpose.msra.mxu0 0.0
    %738 = vmatprep.subr.mxu0 0.0
    %739 = vmatpush1.xpose.msra.mxu0 0.0
    %740 = vmatprep.subr.mxu0 0.0
    %741 = vmatpush1.xpose.msra.mxu0 0.0
    %742 = vmatprep.subr.mxu0 0.0
    %743 = vmatpush1.xpose.msra.mxu0 0.0
    %744 = vmatprep.subr.mxu0 0.0
    %745 = vmatpush1.xpose.msra.mxu0 0.0
    %746 = vmatprep.subr.mxu0 0.0
    %747 = vmatpush1.xpose.msra.mxu0 0.0
    %748 = vmatprep.subr.mxu0 0.0
    %749 = vmatpush1.xpose.msra.mxu0 0.0
    %750 = vmatprep.subr.mxu0 0.0
    %751 = vmatpush1.xpose.msra.mxu0 0.0
    %752 = vmatprep.subr.mxu0 0.0
    %753 = vmatpush1.xpose.msra.mxu0 0.0
    %754 = vmatprep.subr.mxu0 0.0
    %755 = vmatpush1.xpose.msra.mxu0 0.0
    %756 = vmatprep.subr.mxu0 0.0
    %757 = vmatpush1.xpose.msra.mxu0 0.0
    %758 = vmatprep.subr.mxu0 0.0
    %759 = vmatpush1.xpose.msra.mxu0 0.0
    %760 = vmatprep.subr.mxu0 0.0
    %761 = vmatpush1.xpose.msra.mxu0 0.0
    %762 = vmatprep.subr.mxu0 0.0
    %763 = vmatpush1.xpose.msra.mxu0 0.0
    %764 = vmatprep.subr.mxu0 0.0
    %765 = vmatpush1.xpose.msra.mxu0 0.0
    %766 = vmatprep.subr.mxu0 0.0
    %767 = vmatpush1.xpose.msra.mxu0 0.0
    %768 = vmatprep.subr.mxu0 0.0
    %769 = vmatpush1.xpose.msra.mxu0 0.0
    %770 = vmatprep.subr.mxu0 0.0
    %771 = vmatpush1.xpose.msra.mxu0 0.0
    %772 = vmatprep.subr.mxu0 0.0
    %773 = vmatpush1.xpose.msra.mxu0 0.0
    %774 = vmatprep.subr.mxu0 0.0
    %775 = vmatpush1.xpose.msra.mxu0 0.0
    %776 = vmatprep.subr.mxu0 0.0
    %777 = vmatpush1.xpose.msra.mxu0 0.0
    %778 = vmatprep.subr.mxu0 0.0
    %779 = vmatpush1.xpose.msra.mxu0 0.0
    %780 = vmatprep.subr.mxu0 0.0
    %781 = vmatpush1.xpose.msra.mxu0 0.0
    %782 = vmatprep.mubr.f32.mxu0 0.0
    %783 = vmatmul.mubr.f32.gmra.mrb[0].mxu0 %v714
    %v784 = vpop.f32.mrb[0].mxu0
    %v785 = vadd.f32 0.0, %v784
    %v786 = vpop.f32.mrb[0].mxu0
    %787 = vdwg.mxu0
    %788 = vrot.lane.b32.xlu0 %v376, 112
    %v789 = vpop.permute.xlu0 %788
    %790 = vrot.lane.b32.xlu0 %v273, 112
    %v791 = vpop.permute.xlu0 %790
    %v792 = vsel %vm382, %v789, 0
    %v794 = vsel %vm382, %v791, 0
    %796 = vmatprep.subr.mxu0 0.0
    %797 = vmatpush1.xpose.msra.mxu0 %v794
    %798 = vmatprep.subr.mxu0 0.0
    %799 = vmatpush1.xpose.msra.mxu0 0.0
    %800 = vmatprep.subr.mxu0 0.0
    %801 = vmatpush1.xpose.msra.mxu0 0.0
    %802 = vmatprep.subr.mxu0 0.0
    %803 = vmatpush1.xpose.msra.mxu0 0.0
    %804 = vmatprep.subr.mxu0 0.0
    %805 = vmatpush1.xpose.msra.mxu0 0.0
    %806 = vmatprep.subr.mxu0 0.0
    %807 = vmatpush1.xpose.msra.mxu0 0.0
    %808 = vmatprep.subr.mxu0 0.0
    %809 = vmatpush1.xpose.msra.mxu0 0.0
    %810 = vmatprep.subr.mxu0 0.0
    %811 = vmatpush1.xpose.msra.mxu0 0.0
    %812 = vmatprep.subr.mxu0 0.0
    %813 = vmatpush1.xpose.msra.mxu0 0.0
    %814 = vmatprep.subr.mxu0 0.0
    %815 = vmatpush1.xpose.msra.mxu0 0.0
    %816 = vmatprep.subr.mxu0 0.0
    %817 = vmatpush1.xpose.msra.mxu0 0.0
    %818 = vmatprep.subr.mxu0 0.0
    %819 = vmatpush1.xpose.msra.mxu0 0.0
    %820 = vmatprep.subr.mxu0 0.0
    %821 = vmatpush1.xpose.msra.mxu0 0.0
    %822 = vmatprep.subr.mxu0 0.0
    %823 = vmatpush1.xpose.msra.mxu0 0.0
    %824 = vmatprep.subr.mxu0 0.0
    %825 = vmatpush1.xpose.msra.mxu0 0.0
    %826 = vmatprep.subr.mxu0 0.0
    %827 = vmatpush1.xpose.msra.mxu0 0.0
    %828 = vmatprep.subr.mxu0 0.0
    %829 = vmatpush1.xpose.msra.mxu0 0.0
    %830 = vmatprep.subr.mxu0 0.0
    %831 = vmatpush1.xpose.msra.mxu0 0.0
    %832 = vmatprep.subr.mxu0 0.0
    %833 = vmatpush1.xpose.msra.mxu0 0.0
    %834 = vmatprep.subr.mxu0 0.0
    %835 = vmatpush1.xpose.msra.mxu0 0.0
    %836 = vmatprep.subr.mxu0 0.0
    %837 = vmatpush1.xpose.msra.mxu0 0.0
    %838 = vmatprep.subr.mxu0 0.0
    %839 = vmatpush1.xpose.msra.mxu0 0.0
    %840 = vmatprep.subr.mxu0 0.0
    %841 = vmatpush1.xpose.msra.mxu0 0.0
    %842 = vmatprep.subr.mxu0 0.0
    %843 = vmatpush1.xpose.msra.mxu0 0.0
    %844 = vmatprep.subr.mxu0 0.0
    %845 = vmatpush1.xpose.msra.mxu0 0.0
    %846 = vmatprep.subr.mxu0 0.0
    %847 = vmatpush1.xpose.msra.mxu0 0.0
    %848 = vmatprep.subr.mxu0 0.0
    %849 = vmatpush1.xpose.msra.mxu0 0.0
    %850 = vmatprep.subr.mxu0 0.0
    %851 = vmatpush1.xpose.msra.mxu0 0.0
    %852 = vmatprep.subr.mxu0 0.0
    %853 = vmatpush1.xpose.msra.mxu0 0.0
    %854 = vmatprep.subr.mxu0 0.0
    %855 = vmatpush1.xpose.msra.mxu0 0.0
    %856 = vmatprep.subr.mxu0 0.0
    %857 = vmatpush1.xpose.msra.mxu0 0.0
    %858 = vmatprep.subr.mxu0 0.0
    %859 = vmatpush1.xpose.msra.mxu0 0.0
    %860 = vmatprep.mubr.f32.mxu0 0.0
    %861 = vmatmul.mubr.f32.gmra.mrb[0].mxu0 %v792
    %v862 = vpop.f32.mrb[0].mxu0
    %v863 = vadd.f32 0.0, %v862
    %v864 = vpop.f32.mrb[0].mxu0
    %865 = vdwg.mxu0
    %v866 = vsel %vm536, %v785, -1e+32
    %v867 = vsel %vm536, %v863, -1e+32
    %v868 = vsel %vm539, %v866, -inf
    %869 = vmax.xlane.f32.xlu0 %v868
    %v870 = vpop.xlane.xlu0 %869
    %v871 = vsel %vm539, %v867, -inf
    %872 = vmax.xlane.f32.xlu0 %v871
    %v873 = vpop.xlane.xlu0 %872
    %v874 = vsub.f32 %v866, %v870
    %v875 = vsub.f32 %v867, %v873
    %v876 = vmul.f32 %v874, 1.442695
    %v877 = vpow.pop %v876
    %v878 = vmul.f32 %v875, 1.442695
    %v879 = vpow.pop %v878
    %v880 = vsel %vm539, %v877, 0.0
    %881 = vadd.xlane.f32.xlu0 %v880
    %v882 = vpop.xlane.xlu0 %881
    %v883 = vsel %vm539, %v879, 0.0
    %884 = vadd.xlane.f32.xlu0 %v883
    %v885 = vpop.xlane.xlu0 %884
    %v886 = vrcp.pop %v882
    %v887 = vrcp.pop %v885
    %v888 = vmul.f32 %v877, %v886
    %v889 = vmul.f32 %v879, %v887
    %891 = vrot.lane.b32.xlu0 %v367, 112
    %v892 = vpop.permute.xlu0 %891
    %v895 = vsel %vm539, %v888, 0
    %897 = vmatprep.subr.mxu0 0.0
    %898 = vmatpush1.msra.mxu0 %v892
    %899 = vmatprep.subr.mxu0 0.0
    %900 = vmatpush1.msra.mxu0 0.0
    %901 = vmatprep.subr.mxu0 0.0
    %902 = vmatpush1.msra.mxu0 0.0
    %903 = vmatprep.subr.mxu0 0.0
    %904 = vmatpush1.msra.mxu0 0.0
    %905 = vmatprep.subr.mxu0 0.0
    %906 = vmatpush1.msra.mxu0 0.0
    %907 = vmatprep.subr.mxu0 0.0
    %908 = vmatpush1.msra.mxu0 0.0
    %909 = vmatprep.subr.mxu0 0.0
    %910 = vmatpush1.msra.mxu0 0.0
    %911 = vmatprep.subr.mxu0 0.0
    %912 = vmatpush1.msra.mxu0 0.0
    %913 = vmatprep.subr.mxu0 0.0
    %914 = vmatpush1.msra.mxu0 0.0
    %915 = vmatprep.subr.mxu0 0.0
    %916 = vmatpush1.msra.mxu0 0.0
    %917 = vmatprep.subr.mxu0 0.0
    %918 = vmatpush1.msra.mxu0 0.0
    %919 = vmatprep.subr.mxu0 0.0
    %920 = vmatpush1.msra.mxu0 0.0
    %921 = vmatprep.subr.mxu0 0.0
    %922 = vmatpush1.msra.mxu0 0.0
    %923 = vmatprep.subr.mxu0 0.0
    %924 = vmatpush1.msra.mxu0 0.0
    %925 = vmatprep.subr.mxu0 0.0
    %926 = vmatpush1.msra.mxu0 0.0
    %927 = vmatprep.subr.mxu0 0.0
    %928 = vmatpush1.msra.mxu0 0.0
    %929 = vmatprep.subr.mxu0 0.0
    %930 = vmatpush1.msra.mxu0 0.0
    %931 = vmatprep.subr.mxu0 0.0
    %932 = vmatpush1.msra.mxu0 0.0
    %933 = vmatprep.subr.mxu0 0.0
    %934 = vmatpush1.msra.mxu0 0.0
    %935 = vmatprep.subr.mxu0 0.0
    %936 = vmatpush1.msra.mxu0 0.0
    %937 = vmatprep.subr.mxu0 0.0
    %938 = vmatpush1.msra.mxu0 0.0
    %939 = vmatprep.subr.mxu0 0.0
    %940 = vmatpush1.msra.mxu0 0.0
    %941 = vmatprep.subr.mxu0 0.0
    %942 = vmatpush1.msra.mxu0 0.0
    %943 = vmatprep.subr.mxu0 0.0
    %944 = vmatpush1.msra.mxu0 0.0
    %945 = vmatprep.subr.mxu0 0.0
    %946 = vmatpush1.msra.mxu0 0.0
    %947 = vmatprep.subr.mxu0 0.0
    %948 = vmatpush1.msra.mxu0 0.0
    %949 = vmatprep.subr.mxu0 0.0
    %950 = vmatpush1.msra.mxu0 0.0
    %951 = vmatprep.subr.mxu0 0.0
    %952 = vmatpush1.msra.mxu0 0.0
    %953 = vmatprep.subr.mxu0 0.0
    %954 = vmatpush1.msra.mxu0 0.0
    %955 = vmatprep.subr.mxu0 0.0
    %956 = vmatpush1.msra.mxu0 0.0
    %957 = vmatprep.subr.mxu0 0.0
    %958 = vmatpush1.msra.mxu0 0.0
    %959 = vmatprep.subr.mxu0 0.0
    %960 = vmatpush1.msra.mxu0 0.0
    %961 = vmatprep.mubr.f32.mxu0 0.0
    %962 = vmatmul.mubr.f32.gmra.mrb[0].mxu0 %v895
    %v963 = vpop.f32.mrb[0].mxu0
    %v964 = vadd.f32 0.0, %v963
    %v965 = vpop.f32.mrb[0].mxu0
    %966 = vdwg.mxu0
    %968 = vrot.lane.b32.xlu0 %v372, 112
    %v969 = vpop.permute.xlu0 %968
    %v972 = vsel %vm539, %v889, 0
    %974 = vmatprep.subr.mxu0 0.0
    %975 = vmatpush1.msra.mxu0 %v969
    %976 = vmatprep.subr.mxu0 0.0
    %977 = vmatpush1.msra.mxu0 0.0
    %978 = vmatprep.subr.mxu0 0.0
    %979 = vmatpush1.msra.mxu0 0.0
    %980 = vmatprep.subr.mxu0 0.0
    %981 = vmatpush1.msra.mxu0 0.0
    %982 = vmatprep.subr.mxu0 0.0
    %983 = vmatpush1.msra.mxu0 0.0
    %984 = vmatprep.subr.mxu0 0.0
    %985 = vmatpush1.msra.mxu0 0.0
    %986 = vmatprep.subr.mxu0 0.0
    %987 = vmatpush1.msra.mxu0 0.0
    %988 = vmatprep.subr.mxu0 0.0
    %989 = vmatpush1.msra.mxu0 0.0
    %990 = vmatprep.subr.mxu0 0.0
    %991 = vmatpush1.msra.mxu0 0.0
    %992 = vmatprep.subr.mxu0 0.0
    %993 = vmatpush1.msra.mxu0 0.0
    %994 = vmatprep.subr.mxu0 0.0
    %995 = vmatpush1.msra.mxu0 0.0
    %996 = vmatprep.subr.mxu0 0.0
    %997 = vmatpush1.msra.mxu0 0.0
    %998 = vmatprep.subr.mxu0 0.0
    %999 = vmatpush1.msra.mxu0 0.0
    %1000 = vmatprep.subr.mxu0 0.0
    %1001 = vmatpush1.msra.mxu0 0.0
    %1002 = vmatprep.subr.mxu0 0.0
    %1003 = vmatpush1.msra.mxu0 0.0
    %1004 = vmatprep.subr.mxu0 0.0
    %1005 = vmatpush1.msra.mxu0 0.0
    %1006 = vmatprep.subr.mxu0 0.0
    %1007 = vmatpush1.msra.mxu0 0.0
    %1008 = vmatprep.subr.mxu0 0.0
    %1009 = vmatpush1.msra.mxu0 0.0
    %1010 = vmatprep.subr.mxu0 0.0
    %1011 = vmatpush1.msra.mxu0 0.0
    %1012 = vmatprep.subr.mxu0 0.0
    %1013 = vmatpush1.msra.mxu0 0.0
    %1014 = vmatprep.subr.mxu0 0.0
    %1015 = vmatpush1.msra.mxu0 0.0
    %1016 = vmatprep.subr.mxu0 0.0
    %1017 = vmatpush1.msra.mxu0 0.0
    %1018 = vmatprep.subr.mxu0 0.0
    %1019 = vmatpush1.msra.mxu0 0.0
    %1020 = vmatprep.subr.mxu0 0.0
    %1021 = vmatpush1.msra.mxu0 0.0
    %1022 = vmatprep.subr.mxu0 0.0
    %1023 = vmatpush1.msra.mxu0 0.0
    %1024 = vmatprep.subr.mxu0 0.0
    %1025 = vmatpush1.msra.mxu0 0.0
    %1026 = vmatprep.subr.mxu0 0.0
    %1027 = vmatpush1.msra.mxu0 0.0
    %1028 = vmatprep.subr.mxu0 0.0
    %1029 = vmatpush1.msra.mxu0 0.0
    %1030 = vmatprep.subr.mxu0 0.0
    %1031 = vmatpush1.msra.mxu0 0.0
    %1032 = vmatprep.subr.mxu0 0.0
    %1033 = vmatpush1.msra.mxu0 0.0
    %1034 = vmatprep.subr.mxu0 0.0
    %1035 = vmatpush1.msra.mxu0 0.0
    %1036 = vmatprep.subr.mxu0 0.0
    %1037 = vmatpush1.msra.mxu0 0.0
    %1038 = vmatprep.mubr.f32.mxu0 0.0
    %1039 = vmatmul.mubr.f32.gmra.mrb[0].mxu0 %v972
    %v1040 = vpop.f32.mrb[0].mxu0
    %v1041 = vadd.f32 0.0, %v1040
    %v1042 = vpop.f32.mrb[0].mxu0
    %1043 = vdwg.mxu0
    %1046 = vrot.lane.b32.xlu0 %v964, 16
    %v1047 = vpop.permute.xlu0 %1046
    %1048 = vrot.lane.b32.xlu0 %v1041, 16
    %v1049 = vpop.permute.xlu0 %1048
    %vm1052 = vcmask 261248
    %1053 = vst.msk [vmem:[#allocation2] sm:$0xff] %vm1052, %v1047
    %1054 = vst.msk [vmem:[#allocation2 + $0x8] sm:$0xff] %vm1052, %v1049
    %v1055 = vld [vmem:[#allocation2] sm:$0xff]
    %v1056 = vld [vmem:[#allocation2 + $0x8] sm:$0xff]
    %v1057 = vld [vmem:[%s4] sm:$0xff]
    %v1058 = vld [vmem:[%s4 + $0x8] sm:$0xff]
    %v1059 = vld [vmem:[%s4 + $0x10] sm:$0xff]
    %v1060 = vld [vmem:[%s4 + $0x18] sm:$0xff]
    %v1062 = vsel %vm91, %v1055, 0
    %v1065 = vsel %vm91, %v1056, 0
    %1067 = vmatprep.subr.mxu0 0.0
    %1068 = vmatpush1.msra.mxu0 %v1057
    %1069 = vmatprep.subr.mxu0 0.0
    %1070 = vmatpush1.msra.mxu0 %v1058
    %1071 = vmatprep.subr.mxu0 0.0
    %1072 = vmatpush1.msra.mxu0 %v1059
    %1073 = vmatprep.subr.mxu0 0.0
    %1074 = vmatpush1.msra.mxu0 %v1060
    %1075 = vmatprep.subr.mxu0 0.0
    %1076 = vmatpush1.msra.mxu0 0.0
    %1077 = vmatprep.subr.mxu0 0.0
    %1078 = vmatpush1.msra.mxu0 0.0
    %1079 = vmatprep.subr.mxu0 0.0
    %1080 = vmatpush1.msra.mxu0 0.0
    %1081 = vmatprep.subr.mxu0 0.0
    %1082 = vmatpush1.msra.mxu0 0.0
    %1083 = vmatprep.subr.mxu0 0.0
    %1084 = vmatpush1.msra.mxu0 0.0
    %1085 = vmatprep.subr.mxu0 0.0
    %1086 = vmatpush1.msra.mxu0 0.0
    %1087 = vmatprep.subr.mxu0 0.0
    %1088 = vmatpush1.msra.mxu0 0.0
    %1089 = vmatprep.subr.mxu0 0.0
    %1090 = vmatpush1.msra.mxu0 0.0
    %1091 = vmatprep.subr.mxu0 0.0
    %1092 = vmatpush1.msra.mxu0 0.0
    %1093 = vmatprep.subr.mxu0 0.0
    %1094 = vmatpush1.msra.mxu0 0.0
    %1095 = vmatprep.subr.mxu0 0.0
    %1096 = vmatpush1.msra.mxu0 0.0
    %1097 = vmatprep.subr.mxu0 0.0
    %1098 = vmatpush1.msra.mxu0 0.0
    %1099 = vmatprep.subr.mxu0 0.0
    %1100 = vmatpush1.msra.mxu0 0.0
    %1101 = vmatprep.subr.mxu0 0.0
    %1102 = vmatpush1.msra.mxu0 0.0
    %1103 = vmatprep.subr.mxu0 0.0
    %1104 = vmatpush1.msra.mxu0 0.0
    %1105 = vmatprep.subr.mxu0 0.0
    %1106 = vmatpush1.msra.mxu0 0.0
    %1107 = vmatprep.subr.mxu0 0.0
    %1108 = vmatpush1.msra.mxu0 0.0
    %1109 = vmatprep.subr.mxu0 0.0
    %1110 = vmatpush1.msra.mxu0 0.0
    %1111 = vmatprep.subr.mxu0 0.0
    %1112 = vmatpush1.msra.mxu0 0.0
    %1113 = vmatprep.subr.mxu0 0.0
    %1114 = vmatpush1.msra.mxu0 0.0
    %1115 = vmatprep.subr.mxu0 0.0
    %1116 = vmatpush1.msra.mxu0 0.0
    %1117 = vmatprep.subr.mxu0 0.0
    %1118 = vmatpush1.msra.mxu0 0.0
    %1119 = vmatprep.subr.mxu0 0.0
    %1120 = vmatpush1.msra.mxu0 0.0
    %1121 = vmatprep.subr.mxu0 0.0
    %1122 = vmatpush1.msra.mxu0 0.0
    %1123 = vmatprep.subr.mxu0 0.0
    %1124 = vmatpush1.msra.mxu0 0.0
    %1125 = vmatprep.subr.mxu0 0.0
    %1126 = vmatpush1.msra.mxu0 0.0
    %1127 = vmatprep.subr.mxu0 0.0
    %1128 = vmatpush1.msra.mxu0 0.0
    %1129 = vmatprep.subr.mxu0 0.0
    %1130 = vmatpush1.msra.mxu0 0.0
    %1131 = vmatprep.mubr.f32.mxu0 0.0
    %1132 = vmatmul.mubr.f32.gmra.mrb[0].mxu0 %v1062
    %v1133 = vpop.f32.mrb[0].mxu0
    %v1134 = vadd.f32 0.0, %v1133
    %v1135 = vpop.f32.mrb[0].mxu0
    %1136 = vmatprep.mubr.f32.mxu0 0.0
    %1137 = vmatmul.mubr.f32.gmra.mrb[0].mxu0 %v1065
    %v1138 = vpop.f32.mrb[0].mxu0
    %v1139 = vadd.f32 0.0, %v1138
    %v1140 = vpop.f32.mrb[0].mxu0
    %1141 = vdwg.mxu0
    %vm1142 = vcmp.eq.s32.totalorder %v378, 0
    %v1143 = vsel %vm1142, 1, 0
    %vm1144 = vcmp.eq.s32.totalorder %v1143, 1
    %v1145 = vsel %vm1144, 0.0, %v1134
    %v1146 = vsel %vm1144, 0.0, %v1139
    %v1147 = vlaneseq
    %v1148 = vshrl.u32 %v1147, 7
    %v1149 = vsub.s32 0, %v1148
    %v1150 = vrot.slane %v74, %v1149
    %v1151 = vadd.f32 %v1145, %v1150
    %v1152 = vadd.f32 %v1146, %v1150
    %v1153 = vadd.f32 %v81, %v1151
    %v1154 = vadd.f32 %v82, %v1152
    %v1155 = vsel %vm91, %v1153, 0.0
    %1156 = vadd.xlane.f32.xlu0 %v1155
    %v1157 = vpop.xlane.xlu0 %1156
    %v1158 = vsel %vm91, %v1154, 0.0
    %1159 = vadd.xlane.f32.xlu0 %v1158
    %v1160 = vpop.xlane.xlu0 %1159
    %v1161 = vrcp.pop 32.0
    %v1162 = vmul.f32 %v1157, %v1161
    %v1163 = vmul.f32 %v1160, %v1161
    %v1164 = vsub.f32 %v1153, %v1162
    %v1165 = vsub.f32 %v1154, %v1163
    %v1166 = vmul.f32 %v1164, %v1164
    %v1167 = vmul.f32 %v1165, %v1165
    %v1168 = vsel %vm91, %v1166, 0.0
    %1169 = vadd.xlane.f32.xlu0 %v1168
    %v1170 = vpop.xlane.xlu0 %1169
    %v1171 = vsel %vm91, %v1167, 0.0
    %1172 = vadd.xlane.f32.xlu0 %v1171
    %v1173 = vpop.xlane.xlu0 %1172
    %v1174 = vmul.f32 %v1170, %v1161
    %v1175 = vmul.f32 %v1173, %v1161
    %v1176 = vadd.f32 %v1174, 1e-05
    %v1177 = vadd.f32 %v1175, 1e-05
    %v1178 = vrsqrt.pop %v1176
    %v1179 = vrsqrt.pop %v1177
    %v1180 = vmul.f32 %v1164, %v1178
    %v1181 = vmul.f32 %v1165, %v1179
    %v1182 = vlaneseq
    %v1183 = vshrl.u32 %v1182, 7
    %v1184 = vsub.s32 0, %v1183
    %v1185 = vrot.slane %v77, %v1184
    %v1186 = vmul.f32 %v1180, %v1185
    %v1187 = vmul.f32 %v1181, %v1185
    %v1188 = vlaneseq
    %v1189 = vshrl.u32 %v1188, 7
    %v1190 = vsub.s32 0, %v1189
    %v1191 = vrot.slane %v78, %v1190
    %v1192 = vadd.f32 %v1186, %v1191
    %v1193 = vadd.f32 %v1187, %v1191
    %v1194 = vld [vmem:[%s5] sm:$0xff]
    %v1195 = vld [vmem:[%s5 + $0x8] sm:$0xff]
    %v1196 = vld [vmem:[%s5 + $0x10] sm:$0xff]
    %v1197 = vld [vmem:[%s5 + $0x18] sm:$0xff]
    %v1198 = vlaneseq
    %v1199 = vshrl.u32 %v1198, 7
    %v1200 = vsub.s32 0, %v1199
    %v1201 = vrot.slane %v75, %v1200
    %v1203 = vsel %vm91, %v1192, 0
    %v1206 = vsel %vm91, %v1193, 0
    %1208 = vmatprep.subr.mxu0 0.0
    %1209 = vmatpush1.msra.mxu0 %v1194
    %1210 = vmatprep.subr.mxu0 0.0
    %1211 = vmatpush1.msra.mxu0 %v1195
    %1212 = vmatprep.subr.mxu0 0.0
    %1213 = vmatpush1.msra.mxu0 %v1196
    %1214 = vmatprep.subr.mxu0 0.0
    %1215 = vmatpush1.msra.mxu0 %v1197
    %1216 = vmatprep.subr.mxu0 0.0
    %1217 = vmatpush1.msra.mxu0 0.0
    %1218 = vmatprep.subr.mxu0 0.0
    %1219 = vmatpush1.msra.mxu0 0.0
    %1220 = vmatprep.subr.mxu0 0.0
    %1221 = vmatpush1.msra.mxu0 0.0
    %1222 = vmatprep.subr.mxu0 0.0
    %1223 = vmatpush1.msra.mxu0 0.0
    %1224 = vmatprep.subr.mxu0 0.0
    %1225 = vmatpush1.msra.mxu0 0.0
    %1226 = vmatprep.subr.mxu0 0.0
    %1227 = vmatpush1.msra.mxu0 0.0
    %1228 = vmatprep.subr.mxu0 0.0
    %1229 = vmatpush1.msra.mxu0 0.0
    %1230 = vmatprep.subr.mxu0 0.0
    %1231 = vmatpush1.msra.mxu0 0.0
    %1232 = vmatprep.subr.mxu0 0.0
    %1233 = vmatpush1.msra.mxu0 0.0
    %1234 = vmatprep.subr.mxu0 0.0
    %1235 = vmatpush1.msra.mxu0 0.0
    %1236 = vmatprep.subr.mxu0 0.0
    %1237 = vmatpush1.msra.mxu0 0.0
    %1238 = vmatprep.subr.mxu0 0.0
    %1239 = vmatpush1.msra.mxu0 0.0
    %1240 = vmatprep.subr.mxu0 0.0
    %1241 = vmatpush1.msra.mxu0 0.0
    %1242 = vmatprep.subr.mxu0 0.0
    %1243 = vmatpush1.msra.mxu0 0.0
    %1244 = vmatprep.subr.mxu0 0.0
    %1245 = vmatpush1.msra.mxu0 0.0
    %1246 = vmatprep.subr.mxu0 0.0
    %1247 = vmatpush1.msra.mxu0 0.0
    %1248 = vmatprep.subr.mxu0 0.0
    %1249 = vmatpush1.msra.mxu0 0.0
    %1250 = vmatprep.subr.mxu0 0.0
    %1251 = vmatpush1.msra.mxu0 0.0
    %1252 = vmatprep.subr.mxu0 0.0
    %1253 = vmatpush1.msra.mxu0 0.0
    %1254 = vmatprep.subr.mxu0 0.0
    %1255 = vmatpush1.msra.mxu0 0.0
    %1256 = vmatprep.subr.mxu0 0.0
    %1257 = vmatpush1.msra.mxu0 0.0
    %1258 = vmatprep.subr.mxu0 0.0
    %1259 = vmatpush1.msra.mxu0 0.0
    %1260 = vmatprep.subr.mxu0 0.0
    %1261 = vmatpush1.msra.mxu0 0.0
    %1262 = vmatprep.subr.mxu0 0.0
    %1263 = vmatpush1.msra.mxu0 0.0
    %1264 = vmatprep.subr.mxu0 0.0
    %1265 = vmatpush1.msra.mxu0 0.0
    %1266 = vmatprep.subr.mxu0 0.0
    %1267 = vmatpush1.msra.mxu0 0.0
    %1268 = vmatprep.subr.mxu0 0.0
    %1269 = vmatpush1.msra.mxu0 0.0
    %1270 = vmatprep.subr.mxu0 0.0
    %1271 = vmatpush1.msra.mxu0 0.0
    %1272 = vmatprep.mubr.f32.mxu0 0.0
    %1273 = vmatmul.mubr.f32.gmra.mrb[0].mxu0 %v1203
    %v1274 = vpop.f32.mrb[0].mxu0
    %v1275 = vadd.f32 %v1201, %v1274
    %v1276 = vpop.f32.mrb[0].mxu0
    %1277 = vmatprep.mubr.f32.mxu0 0.0
    %1278 = vmatmul.mubr.f32.gmra.mrb[0].mxu0 %v1206
    %v1279 = vpop.f32.mrb[0].mxu0
    %v1280 = vadd.f32 %v1201, %v1279
    %v1281 = vpop.f32.mrb[0].mxu0
    %1282 = vdwg.mxu0
    %v1283 = vmax.f32 %v1275, 0.0
    %v1284 = vmax.f32 %v1280, 0.0
    %v1285 = vld [vmem:[%s6] sm:$0xff]
    %v1286 = vld [vmem:[%s6 + $0x8] sm:$0xff]
    %v1287 = vld [vmem:[%s6 + $0x10] sm:$0xff]
    %v1288 = vld [vmem:[%s6 + $0x18] sm:$0xff]
    %v1289 = vld [vmem:[%s6 + $0x20] sm:$0xff]
    %v1290 = vld [vmem:[%s6 + $0x28] sm:$0xff]
    %v1291 = vld [vmem:[%s6 + $0x30] sm:$0xff]
    %v1292 = vld [vmem:[%s6 + $0x38] sm:$0xff]
    %v1293 = vlaneseq
    %v1294 = vshrl.u32 %v1293, 7
    %v1295 = vsub.s32 0, %v1294
    %v1296 = vrot.slane %v76, %v1295
    %vm1297 = vcmask 523264
    %v1299 = vsel %vm1297, %v1283, 0
    %v1302 = vsel %vm1297, %v1284, 0
    %1304 = vmatprep.subr.mxu0 0.0
    %1305 = vmatpush1.msra.mxu0 %v1285
    %1306 = vmatprep.subr.mxu0 0.0
    %1307 = vmatpush1.msra.mxu0 %v1286
    %1308 = vmatprep.subr.mxu0 0.0
    %1309 = vmatpush1.msra.mxu0 %v1287
    %1310 = vmatprep.subr.mxu0 0.0
    %1311 = vmatpush1.msra.mxu0 %v1288
    %1312 = vmatprep.subr.mxu0 0.0
    %1313 = vmatpush1.msra.mxu0 %v1289
    %1314 = vmatprep.subr.mxu0 0.0
    %1315 = vmatpush1.msra.mxu0 %v1290
    %1316 = vmatprep.subr.mxu0 0.0
    %1317 = vmatpush1.msra.mxu0 %v1291
    %1318 = vmatprep.subr.mxu0 0.0
    %1319 = vmatpush1.msra.mxu0 %v1292
    %1320 = vmatprep.subr.mxu0 0.0
    %1321 = vmatpush1.msra.mxu0 0.0
    %1322 = vmatprep.subr.mxu0 0.0
    %1323 = vmatpush1.msra.mxu0 0.0
    %1324 = vmatprep.subr.mxu0 0.0
    %1325 = vmatpush1.msra.mxu0 0.0
    %1326 = vmatprep.subr.mxu0 0.0
    %1327 = vmatpush1.msra.mxu0 0.0
    %1328 = vmatprep.subr.mxu0 0.0
    %1329 = vmatpush1.msra.mxu0 0.0
    %1330 = vmatprep.subr.mxu0 0.0
    %1331 = vmatpush1.msra.mxu0 0.0
    %1332 = vmatprep.subr.mxu0 0.0
    %1333 = vmatpush1.msra.mxu0 0.0
    %1334 = vmatprep.subr.mxu0 0.0
    %1335 = vmatpush1.msra.mxu0 0.0
    %1336 = vmatprep.subr.mxu0 0.0
    %1337 = vmatpush1.msra.mxu0 0.0
    %1338 = vmatprep.subr.mxu0 0.0
    %1339 = vmatpush1.msra.mxu0 0.0
    %1340 = vmatprep.subr.mxu0 0.0
    %1341 = vmatpush1.msra.mxu0 0.0
    %1342 = vmatprep.subr.mxu0 0.0
    %1343 = vmatpush1.msra.mxu0 0.0
    %1344 = vmatprep.subr.mxu0 0.0
    %1345 = vmatpush1.msra.mxu0 0.0
    %1346 = vmatprep.subr.mxu0 0.0
    %1347 = vmatpush1.msra.mxu0 0.0
    %1348 = vmatprep.subr.mxu0 0.0
    %1349 = vmatpush1.msra.mxu0 0.0
    %1350 = vmatprep.subr.mxu0 0.0
    %1351 = vmatpush1.msra.mxu0 0.0
    %1352 = vmatprep.subr.mxu0 0.0
    %1353 = vmatpush1.msra.mxu0 0.0
    %1354 = vmatprep.subr.mxu0 0.0
    %1355 = vmatpush1.msra.mxu0 0.0
    %1356 = vmatprep.subr.mxu0 0.0
    %1357 = vmatpush1.msra.mxu0 0.0
    %1358 = vmatprep.subr.mxu0 0.0
    %1359 = vmatpush1.msra.mxu0 0.0
    %1360 = vmatprep.subr.mxu0 0.0
    %1361 = vmatpush1.msra.mxu0 0.0
    %1362 = vmatprep.subr.mxu0 0.0
    %1363 = vmatpush1.msra.mxu0 0.0
    %1364 = vmatprep.subr.mxu0 0.0
    %1365 = vmatpush1.msra.mxu0 0.0
    %1366 = vmatprep.subr.mxu0 0.0
    %1367 = vmatpush1.msra.mxu0 0.0
    %1368 = vmatprep.mubr.f32.mxu0 0.0
    %1369 = vmatmul.mubr.f32.gmra.mrb[0].mxu0 %v1299
    %v1370 = vpop.f32.mrb[0].mxu0
    %v1371 = vadd.f32 %v1296, %v1370
    %v1372 = vpop.f32.mrb[0].mxu0
    %1373 = vmatprep.mubr.f32.mxu0 0.0
    %1374 = vmatmul.mubr.f32.gmra.mrb[0].mxu0 %v1302
    %v1375 = vpop.f32.mrb[0].mxu0
    %v1376 = vadd.f32 %v1296, %v1375
    %v1377 = vpop.f32.mrb[0].mxu0
    %1378 = vdwg.mxu0
    %v1379 = vadd.f32 %v1192, %v1371
    %v1380 = vadd.f32 %v1193, %v1376
    %v1381 = vsel %vm91, %v1379, 0.0
    %1382 = vadd.xlane.f32.xlu0 %v1381
    %v1383 = vpop.xlane.xlu0 %1382
    %v1384 = vsel %vm91, %v1380, 0.0
    %1385 = vadd.xlane.f32.xlu0 %v1384
    %v1386 = vpop.xlane.xlu0 %1385
    %v1387 = vmul.f32 %v1383, %v1161
    %v1388 = vmul.f32 %v1386, %v1161
    %v1389 = vsub.f32 %v1379, %v1387
    %v1390 = vsub.f32 %v1380, %v1388
    %v1391 = vmul.f32 %v1389, %v1389
    %v1392 = vmul.f32 %v1390, %v1390
    %v1393 = vsel %vm91, %v1391, 0.0
    %1394 = vadd.xlane.f32.xlu0 %v1393
    %v1395 = vpop.xlane.xlu0 %1394
    %v1396 = vsel %vm91, %v1392, 0.0
    %1397 = vadd.xlane.f32.xlu0 %v1396
    %v1398 = vpop.xlane.xlu0 %1397
    %v1399 = vmul.f32 %v1395, %v1161
    %v1400 = vmul.f32 %v1398, %v1161
    %v1401 = vadd.f32 %v1399, 1e-05
    %v1402 = vadd.f32 %v1400, 1e-05
    %v1403 = vrsqrt.pop %v1401
    %v1404 = vrsqrt.pop %v1402
    %v1405 = vmul.f32 %v1389, %v1403
    %v1406 = vmul.f32 %v1390, %v1404
    %v1407 = vlaneseq
    %v1408 = vshrl.u32 %v1407, 7
    %v1409 = vsub.s32 0, %v1408
    %v1410 = vrot.slane %v79, %v1409
    %v1411 = vmul.f32 %v1405, %v1410
    %v1412 = vmul.f32 %v1406, %v1410
    %v1413 = vlaneseq
    %v1414 = vshrl.u32 %v1413, 7
    %v1415 = vsub.s32 0, %v1414
    %v1416 = vrot.slane %v80, %v1415
    %v1417 = vadd.f32 %v1411, %v1416
    %v1418 = vadd.f32 %v1412, %v1416
    %1419 = vst.msk [vmem:[#allocation9] sm:$0xff] %vm91, %v1417
    %1420 = vst.msk [vmem:[#allocation9 + $0x8] sm:$0xff] %vm91, %v1418
    // Predicated region
    $region46: #{tpu_custom_call.1} parent=1 // pred_check
      _
    $region47: #{tpu_custom_call.1} parent=1 // pred_check_branch
      %1422 = sbr.rel (0) target = $region49
    $region48: #{tpu_custom_call.1} parent=1 // pred_region
      %s1424 = ssub.s32 256, 256
      %1425 = vsyncadd [#allocation5], %s1424
      %s1426 = sshll.u32 [#allocation9], 4
      %s1427 = int_to_ptr.vmem [resolvable:$true] %s1426
      %1432 = dma.vmem_to_hbm [thread:$0]  %s1427, 256, %s8, [#allocation5], 128, 128, 8
    $region49: #{tpu_custom_call.1} parent=1 // pred_fallthru
      _
    // Predicated region
    $region50: #{tpu_custom_call.1} parent=1 // pred_check
      _
    $region51: #{tpu_custom_call.1} parent=1 // pred_check_branch
      %1434 = sbr.rel (0) target = $region53
    $region52: #{tpu_custom_call.1} parent=1 // pred_region
      %1435 = dma.done [#allocation5], 256
    $region53: #{tpu_custom_call.1} parent=1 // pred_fallthru
      _
    %1436 = vsyncpa [#allocation4], 1
    %1437 = vsyncpa [#allocation7], 1
    %1438 = vsyncpa [#allocation5], 1

</llo_original>
